<compile_context>
chip_gen: v5e
topology: v5e:2x2
jax: 0.10.0
libtpu: 0.0.40
codegen_flags: <defaults>
</compile_context>

<pallas_src>
import numpy as np
import jax
import jax.numpy as jnp
from jax.experimental import pallas as pl
from jax.experimental.pallas import tpu as pltpu

# ----------------------------- config -------------------------------------
BOUND = 1.0
L = 16                 # opt.L
F = 2                  # features per level
N_MIN = 16
N_MAX = 512 if BOUND <= 1 else int(2048 * BOUND)
LOG2_T = 19 if BOUND <= 1 else 20
T = 1 << LOG2_T
B_SCALE = float(np.exp(np.log(N_MAX / N_MIN) / (L - 1)))
N_FREQ = 6
HIDDEN = 64
D_OUT = 3
D_FREQ = 3 * N_FREQ * 2          # 36 frequency features
D_GRID = L * F                   # 32 hash-grid features
D_HN = 3 + D_GRID                # 35 = [n (3) | h (32)] merged kernel input

_PRIMES = np.array([1, 2654435761, 805459861], dtype=np.uint32)
_CORNERS = np.array([[(c >> d) & 1 for d in range(3)] for c in range(8)],
                    dtype=np.uint32)                       # [8, 3]


def _make_freq_consts():
    """S: [3, 36] with pi*2^j per (dim, col); phase: [1, 36] with 0 or pi/2."""
    s = np.zeros((3, D_FREQ), np.float32)
    p = np.zeros((1, D_FREQ), np.float32)
    for d in range(3):
        for j in range(N_FREQ):
            for par in range(2):
                col = d * (2 * N_FREQ) + 2 * j + par
                s[d, col] = np.pi * (2.0 ** j)
                p[0, col] = par * (np.pi * 0.5)
    return s, p


_S_NP, _PHASE_NP = _make_freq_consts()


def _round_up(x, m):
    return ((x + m - 1) // m) * m


# ------------------------- Pallas kernel (off_net) -------------------------
def _off_net_kernel(hn_ref, s_ref, p_ref, w1h_ref, w1f_ref, b1_ref,
                    w2_ref, b2_ref, o_ref):
    hn = hn_ref[...]                                   # [tb, 35] f32, 0:3 = n

    # Frequency encoding on the VPU in exact f32 (no bf16 angle truncation).
    s = s_ref[...]                                     # [3, 36]
    ang = (hn[:, 0:1] * s[0:1, :]
           + hn[:, 1:2] * s[1:2, :]
           + hn[:, 2:3] * s[2:3, :]) + p_ref[...]
    nenc = jnp.sin(ang)                                # [tb, 36]

    # Layer 1 as two MXU matmuls (no staging slab).  The n-columns of hn hit
    # zero rows of w1h, so no in-kernel split of h vs n is needed.
    z1 = (jnp.dot(hn.astype(jnp.bfloat16), w1h_ref[...],
                  preferred_element_type=jnp.float32)
          + jnp.dot(nenc.astype(jnp.bfloat16), w1f_ref[...],
                    preferred_element_type=jnp.float32)
          + b1_ref[...])
    a1 = jnp.maximum(z1, 0.0).astype(jnp.bfloat16)     # [tb, 64]

    z2 = jnp.dot(a1, w2_ref[...], preferred_element_type=jnp.float32) \
        + b2_ref[...]                                  # [tb, 3]
    o_ref[...] = jnp.tanh(z2).astype(o_ref.dtype)      # narrow [tb, 3] store


def off_net_pallas(hn, prep, tb=2048):
    """hn: [B, 35] (= [n | hash-grid features])  ->  offsets [B, 3] f32."""
    b_orig = hn.shape[0]
    # Keep at least 2 grid steps when the batch allows it so the "parallel"
    # axis can be sharded across the two v7x TensorCores; clamp for tiny B.
    tb_cap = max(8, _round_up((b_orig + 1) // 2, 8))
    tb = max(8, min(tb, tb_cap))
    b_pad = _round_up(b_orig, tb)
    if b_pad != b_orig:
        hn = jnp.pad(hn, ((0, b_pad - b_orig), (0, 0)))

    out = pl.pallas_call(
        _off_net_kernel,
        out_shape=jax.ShapeDtypeStruct((b_pad, D_OUT), jnp.float32),
        grid_spec=pltpu.PrefetchScalarGridSpec(
            num_scalar_prefetch=0,
            grid=(b_pad // tb,),
            in_specs=[
                pl.BlockSpec((tb, D_HN), lambda i: (i, 0)),        # [n | h]
                pl.BlockSpec((3, D_FREQ), lambda i: (0, 0)),       # S
                pl.BlockSpec((1, D_FREQ), lambda i: (0, 0)),       # phase
                pl.BlockSpec((D_HN, HIDDEN), lambda i: (0, 0)),    # W1 (grid)
                pl.BlockSpec((D_FREQ, HIDDEN), lambda i: (0, 0)),  # W1 (freq)
                pl.BlockSpec((1, HIDDEN), lambda i: (0, 0)),       # b1
                pl.BlockSpec((HIDDEN, D_OUT), lambda i: (0, 0)),   # W2
                pl.BlockSpec((1, D_OUT), lambda i: (0, 0)),        # b2
            ],
            out_specs=pl.BlockSpec((tb, D_OUT), lambda i: (i, 0)),
        ),
        compiler_params=pltpu.CompilerParams(
            dimension_semantics=("parallel",),
            vmem_limit_bytes=32 * 1024 * 1024),
    )(hn, prep["s"], prep["phase"], prep["w1_hn"], prep["w1_f"],
      prep["b1"], prep["w2"], prep["b2"])
    return out[:b_orig]


# ------------------- tcnn HashGrid encoding (JAX glue) ----------------------
# TODO(synk): move this gather + trilinear interpolation into Pallas (table in
#             VMEM on v5e/v6e, per-level streaming DMA on v7x) and fuse with
#             off_net so h never round-trips HBM.
def hash_grid_encode(x01, table, append=None):
    """x01: [B, 3] in [0, 1]; table: [L, T, F]  ->  [B, (3+)L*F] features."""
    n_levels, t_size, _ = table.shape
    corners = jnp.asarray(_CORNERS)                    # [8, 3] uint32
    corners_f = corners.astype(jnp.float32)
    outs = []
    if append is not None:
        outs.append(append.astype(jnp.float32))        # n goes in lanes 0:3
    for lvl in range(n_levels):
        scale = np.exp2(lvl * np.log2(B_SCALE)) * N_MIN - 1.0
        res = int(np.ceil(scale)) + 1
        pos = x01 * scale + 0.5
        pos_grid_f = jnp.floor(pos)
        frac = pos - pos_grid_f                        # [B, 3]
        pos_grid = pos_grid_f.astype(jnp.uint32)       # [B, 3]

        cpos = pos_grid[:, None, :] + corners[None, :, :]          # [B, 8, 3]
        w = jnp.prod(jnp.where(corners_f[None, :, :] == 1.0,
                               frac[:, None, :], 1.0 - frac[:, None, :]),
                     axis=-1)                                      # [B, 8]
        if (res ** 3) <= t_size:
            idx = (cpos[..., 0]
                   + cpos[..., 1] * jnp.uint32(res)
                   + cpos[..., 2] * jnp.uint32(res * res))
        else:
            idx = ((cpos[..., 0] * jnp.uint32(_PRIMES[0]))
                   ^ (cpos[..., 1] * jnp.uint32(_PRIMES[1]))
                   ^ (cpos[..., 2] * jnp.uint32(_PRIMES[2])))
        idx = (idx % jnp.uint32(t_size)).astype(jnp.int32)         # [B, 8]
        gathered = jnp.take(table[lvl], idx, axis=0)               # [B, 8, F]
        outs.append(jnp.sum(w[..., None] * gathered, axis=1))      # [B, F]
    return jnp.concatenate(outs, axis=1)


# --------------------- one-time parameter preparation -----------------------
def prepare_params(params):
    """Pad / cast weights once (hoisted out of the per-step forward)."""
    w1 = params["w1"]                                  # [68, 64] f32
    w1_hn = jnp.zeros((D_HN, HIDDEN), jnp.float32)
    w1_hn = w1_hn.at[3:3 + D_GRID, :].set(w1[:D_GRID, :])   # n rows stay 0
    return {
        "table": params["table"],
        "w1_hn": w1_hn.astype(jnp.bfloat16),           # [35, 64]
        "w1_f": w1[D_GRID:, :].astype(jnp.bfloat16),   # [36, 64]
        "b1": params["b1"],                            # [1, 64] f32
        "w2": params["w2"].astype(jnp.bfloat16),       # [64, 3]
        "b2": params["b2"],                            # [1, 3] f32
        "s": jnp.asarray(_S_NP),                       # [3, 36]
        "phase": jnp.asarray(_PHASE_NP),               # [1, 36]
    }


# ------------------------------ full forward -------------------------------
def norlearner_forward(x, n, prep, tb=2048):
    x01 = (x + BOUND) / (2.0 * BOUND)
    hn = hash_grid_encode(x01, prep["table"], append=n)   # [B, 35]
    return off_net_pallas(hn, prep, tb=tb)


# -------------------------- pure-JAX f32 reference --------------------------
def norlearner_forward_ref(x, n, params):
    x01 = (x + BOUND) / (2.0 * BOUND)
    h = hash_grid_encode(x01, params["table"]).astype(jnp.float32)
    s = jnp.asarray(_S_NP)
    p = jnp.asarray(_PHASE_NP)
    nf = n.astype(jnp.float32)
    ang = nf[:, 0:1] * s[0] + nf[:, 1:2] * s[1] + nf[:, 2:3] * s[2] + p
    nenc = jnp.sin(ang)
    act = jnp.concatenate([h, nenc], axis=1)
    z1 = jnp.maximum(act @ params["w1"] + params["b1"], 0.0)
    z2 = z1 @ params["w2"] + params["b2"]
    return jnp.tanh(z2)


# ------------------------- deterministic parameters -------------------------
def _weight_norm_eff(v, g):
    # torch weight_norm(dim=0): per-output-row norm; effective W = g * v/||v||
    norm = jnp.sqrt(jnp.sum(v * v, axis=1, keepdims=True)) + 1e-12
    return g[:, None] * v / norm


def make_params(key):
    d_in = D_GRID + D_FREQ                   # 68
    ks = jax.random.split(key, 8)
    table = jax.random.uniform(ks[0], (L, T, F), jnp.float32, -1e-4, 1e-4)

    v1 = jax.random.normal(ks[1], (HIDDEN, d_in), jnp.float32) / np.sqrt(d_in)
    g1 = jax.random.uniform(ks[2], (HIDDEN,), jnp.float32, 0.5, 1.5)
    b1 = jax.random.normal(ks[3], (HIDDEN,), jnp.float32) * 0.01
    v2 = jax.random.normal(ks[4], (D_OUT, HIDDEN), jnp.float32) / np.sqrt(HIDDEN)
    g2 = jax.random.uniform(ks[5], (D_OUT,), jnp.float32, 0.5, 1.5)
    b2 = jax.random.normal(ks[6], (D_OUT,), jnp.float32) * 0.01

    w1 = _weight_norm_eff(v1, g1).T          # [68, 64]; rows 0:32 grid, 32:68 freq
    w2 = _weight_norm_eff(v2, g2).T          # [64, 3]
    return {
        "table": table,
        "w1": w1,
        "b1": b1.reshape(1, HIDDEN),
        "w2": w2,
        "b2": b2.reshape(1, D_OUT),
    }


# ----------------------------------- main -----------------------------------
if __name__ == "__main__":
    key = jax.random.PRNGKey(0)
    kx, kn, kp = jax.random.split(key, 3)

    B = 200
    x = jax.random.uniform(kx, (B, 3), jnp.float32, -BOUND, BOUND)
    n = jax.random.uniform(kn, (B, 3), jnp.float32, -1.0, 1.0)
    params = make_params(kp)
    prep = prepare_params(params)            # one-time padding / bf16 casts

    fwd = jax.jit(norlearner_forward, static_argnames=("tb",))
    # tb=64 here so the small demo batch still exercises a multi-step grid.
    offset = jax.block_until_ready(fwd(x, n, prep, tb=64))

    assert offset.shape == (B, D_OUT) and offset.dtype == jnp.float32
    assert bool(jnp.all(jnp.isfinite(offset)))
    assert bool(jnp.all(jnp.abs(offset) <= 1.0))   # tanh range

    ref = norlearner_forward_ref(x, n, params)
    err = float(jnp.max(jnp.abs(offset - ref)))
    assert err < 0.1, f"max abs err vs f32 reference: {err}"
    print("KERNEL_OK")
</pallas_src>

<mosaic_0001>
module attributes {stable_mosaic.version = 11 : i64} {
  func.func @_off_net_kernel(%arg0: i32, %arg1: memref<64x35xf32, #tpu.memory_space<vmem>>, %arg2: memref<3x36xf32, #tpu.memory_space<vmem>>, %arg3: memref<1x36xf32, #tpu.memory_space<vmem>>, %arg4: memref<35x64xbf16, #tpu.memory_space<vmem>>, %arg5: memref<36x64xbf16, #tpu.memory_space<vmem>>, %arg6: memref<1x64xf32, #tpu.memory_space<vmem>>, %arg7: memref<64x3xbf16, #tpu.memory_space<vmem>>, %arg8: memref<1x3xf32, #tpu.memory_space<vmem>>, %arg9: memref<64x3xf32, #tpu.memory_space<vmem>>) attributes {dimension_semantics = [#tpu.dimension_semantics<parallel>], iteration_bounds = array<i64: 4>, scalar_prefetch = 0 : i64, scratch_operands = 0 : i64, tpu.core_type = #tpu.core_type<tc>, window_params = [{transform_indices = @transform_0, window_bounds = array<i64: 64, 35>}, {pipeline_mode = #tpu.pipeline_mode<synchronous>, transform_indices = @transform_1, window_bounds = array<i64: 3, 36>}, {pipeline_mode = #tpu.pipeline_mode<synchronous>, transform_indices = @transform_2, window_bounds = array<i64: 1, 36>}, {pipeline_mode = #tpu.pipeline_mode<synchronous>, transform_indices = @transform_3, window_bounds = array<i64: 35, 64>}, {pipeline_mode = #tpu.pipeline_mode<synchronous>, transform_indices = @transform_4, window_bounds = array<i64: 36, 64>}, {pipeline_mode = #tpu.pipeline_mode<synchronous>, transform_indices = @transform_5, window_bounds = array<i64: 1, 64>}, {pipeline_mode = #tpu.pipeline_mode<synchronous>, transform_indices = @transform_6, window_bounds = array<i64: 64, 3>}, {pipeline_mode = #tpu.pipeline_mode<synchronous>, transform_indices = @transform_7, window_bounds = array<i64: 1, 3>}, {transform_indices = @transform_8, window_bounds = array<i64: 64, 3>}]} {
    %c0 = arith.constant 0 : index
    %c0_0 = arith.constant 0 : index
    %0 = vector.load %arg1[%c0, %c0_0] : memref<64x35xf32, #tpu.memory_space<vmem>>, vector<64x35xf32>
    %c0_1 = arith.constant 0 : index
    %c0_2 = arith.constant 0 : index
    %1 = vector.load %arg2[%c0_1, %c0_2] : memref<3x36xf32, #tpu.memory_space<vmem>>, vector<3x36xf32>
    %2 = vector.extract_strided_slice %0 {offsets = [0, 0], sizes = [64, 1], strides = [1, 1]} : vector<64x35xf32> to vector<64x1xf32>
    %3 = vector.extract_strided_slice %1 {offsets = [0, 0], sizes = [1, 36], strides = [1, 1]} : vector<3x36xf32> to vector<1x36xf32>
    %4 = vector.broadcast %2 : vector<64x1xf32> to vector<64x36xf32>
    %5 = vector.broadcast %3 : vector<1x36xf32> to vector<64x36xf32>
    %6 = arith.mulf %4, %5 : vector<64x36xf32>
    %7 = vector.extract_strided_slice %0 {offsets = [0, 1], sizes = [64, 1], strides = [1, 1]} : vector<64x35xf32> to vector<64x1xf32>
    %8 = vector.extract_strided_slice %1 {offsets = [1, 0], sizes = [1, 36], strides = [1, 1]} : vector<3x36xf32> to vector<1x36xf32>
    %9 = vector.broadcast %7 : vector<64x1xf32> to vector<64x36xf32>
    %10 = vector.broadcast %8 : vector<1x36xf32> to vector<64x36xf32>
    %11 = arith.mulf %9, %10 : vector<64x36xf32>
    %12 = arith.addf %6, %11 : vector<64x36xf32>
    %13 = vector.extract_strided_slice %0 {offsets = [0, 2], sizes = [64, 1], strides = [1, 1]} : vector<64x35xf32> to vector<64x1xf32>
    %14 = vector.extract_strided_slice %1 {offsets = [2, 0], sizes = [1, 36], strides = [1, 1]} : vector<3x36xf32> to vector<1x36xf32>
    %15 = vector.broadcast %13 : vector<64x1xf32> to vector<64x36xf32>
    %16 = vector.broadcast %14 : vector<1x36xf32> to vector<64x36xf32>
    %17 = arith.mulf %15, %16 : vector<64x36xf32>
    %18 = arith.addf %12, %17 : vector<64x36xf32>
    %c0_3 = arith.constant 0 : index
    %c0_4 = arith.constant 0 : index
    %19 = vector.load %arg3[%c0_3, %c0_4] : memref<1x36xf32, #tpu.memory_space<vmem>>, vector<1x36xf32>
    %20 = vector.broadcast %19 : vector<1x36xf32> to vector<64x36xf32>
    %21 = arith.addf %18, %20 : vector<64x36xf32>
    %22 = math.sin %21 : vector<64x36xf32>
    %23 = arith.truncf %0 : vector<64x35xf32> to vector<64x35xbf16>
    %c0_5 = arith.constant 0 : index
    %c0_6 = arith.constant 0 : index
    %24 = vector.load %arg4[%c0_5, %c0_6] : memref<35x64xbf16, #tpu.memory_space<vmem>>, vector<35x64xbf16>
    %cst = arith.constant dense<0.000000e+00> : vector<64x64xf32>
    %25 = tpu.matmul %23, %24, %cst {dimension_numbers = #tpu.dot_dimension_numbers<[1], [0], [0], [1], [0, 0, 1, 1], [], []>} : vector<64x35xbf16>, vector<35x64xbf16>, vector<64x64xf32> -> vector<64x64xf32>
    %26 = arith.truncf %22 : vector<64x36xf32> to vector<64x36xbf16>
    %c0_7 = arith.constant 0 : index
    %c0_8 = arith.constant 0 : index
    %27 = vector.load %arg5[%c0_7, %c0_8] : memref<36x64xbf16, #tpu.memory_space<vmem>>, vector<36x64xbf16>
    %cst_9 = arith.constant dense<0.000000e+00> : vector<64x64xf32>
    %28 = tpu.matmul %26, %27, %cst_9 {dimension_numbers = #tpu.dot_dimension_numbers<[1], [0], [0], [1], [0, 0, 1, 1], [], []>} : vector<64x36xbf16>, vector<36x64xbf16>, vector<64x64xf32> -> vector<64x64xf32>
    %29 = arith.addf %25, %28 : vector<64x64xf32>
    %c0_10 = arith.constant 0 : index
    %c0_11 = arith.constant 0 : index
    %30 = vector.load %arg6[%c0_10, %c0_11] : memref<1x64xf32, #tpu.memory_space<vmem>>, vector<1x64xf32>
    %31 = vector.broadcast %30 : vector<1x64xf32> to vector<64x64xf32>
    %32 = arith.addf %29, %31 : vector<64x64xf32>
    %cst_12 = arith.constant 0.000000e+00 : f32
    %33 = vector.broadcast %cst_12 : f32 to vector<64x64xf32>
    %34 = arith.maximumf %32, %33 : vector<64x64xf32>
    %35 = arith.truncf %34 : vector<64x64xf32> to vector<64x64xbf16>
    %c0_13 = arith.constant 0 : index
    %c0_14 = arith.constant 0 : index
    %36 = vector.load %arg7[%c0_13, %c0_14] : memref<64x3xbf16, #tpu.memory_space<vmem>>, vector<64x3xbf16>
    %cst_15 = arith.constant dense<0.000000e+00> : vector<64x3xf32>
    %37 = tpu.matmul %35, %36, %cst_15 {dimension_numbers = #tpu.dot_dimension_numbers<[1], [0], [0], [1], [0, 0, 1, 1], [], []>} : vector<64x64xbf16>, vector<64x3xbf16>, vector<64x3xf32> -> vector<64x3xf32>
    %c0_16 = arith.constant 0 : index
    %c0_17 = arith.constant 0 : index
    %38 = vector.load %arg8[%c0_16, %c0_17] : memref<1x3xf32, #tpu.memory_space<vmem>>, vector<1x3xf32>
    %39 = vector.broadcast %38 : vector<1x3xf32> to vector<64x3xf32>
    %40 = arith.addf %37, %39 : vector<64x3xf32>
    %41 = math.tanh %40 : vector<64x3xf32>
    %c0_18 = arith.constant 0 : index
    %c0_19 = arith.constant 0 : index
    %42 = vector.load %arg9[%c0_18, %c0_19] : memref<64x3xf32, #tpu.memory_space<vmem>>, vector<64x3xf32>
    tpu.vector_store %arg9[%c0_18, %c0_19], %41 {strides = array<i32>} : memref<64x3xf32, #tpu.memory_space<vmem>>, vector<64x3xf32>,
    return
  }
  func.func @transform_0(%arg0: i32) -> (i32, i32) {
    %c0_i32 = arith.constant 0 : i32
    %c0_i32_0 = arith.constant 0 : i32
    return %arg0, %c0_i32 : i32, i32
  }
  func.func @transform_1(%arg0: i32) -> (i32, i32) {
    %c0_i32 = arith.constant 0 : i32
    %c0_i32_0 = arith.constant 0 : i32
    %c0_i32_1 = arith.constant 0 : i32
    return %c0_i32, %c0_i32_0 : i32, i32
  }
  func.func @transform_2(%arg0: i32) -> (i32, i32) {
    %c0_i32 = arith.constant 0 : i32
    %c0_i32_0 = arith.constant 0 : i32
    %c0_i32_1 = arith.constant 0 : i32
    return %c0_i32, %c0_i32_0 : i32, i32
  }
  func.func @transform_3(%arg0: i32) -> (i32, i32) {
    %c0_i32 = arith.constant 0 : i32
    %c0_i32_0 = arith.constant 0 : i32
    %c0_i32_1 = arith.constant 0 : i32
    return %c0_i32, %c0_i32_0 : i32, i32
  }
  func.func @transform_4(%arg0: i32) -> (i32, i32) {
    %c0_i32 = arith.constant 0 : i32
    %c0_i32_0 = arith.constant 0 : i32
    %c0_i32_1 = arith.constant 0 : i32
    return %c0_i32, %c0_i32_0 : i32, i32
  }
  func.func @transform_5(%arg0: i32) -> (i32, i32) {
    %c0_i32 = arith.constant 0 : i32
    %c0_i32_0 = arith.constant 0 : i32
    %c0_i32_1 = arith.constant 0 : i32
    return %c0_i32, %c0_i32_0 : i32, i32
  }
  func.func @transform_6(%arg0: i32) -> (i32, i32) {
    %c0_i32 = arith.constant 0 : i32
    %c0_i32_0 = arith.constant 0 : i32
    %c0_i32_1 = arith.constant 0 : i32
    return %c0_i32, %c0_i32_0 : i32, i32
  }
  func.func @transform_7(%arg0: i32) -> (i32, i32) {
    %c0_i32 = arith.constant 0 : i32
    %c0_i32_0 = arith.constant 0 : i32
    %c0_i32_1 = arith.constant 0 : i32
    return %c0_i32, %c0_i32_0 : i32, i32
  }
  func.func @transform_8(%arg0: i32) -> (i32, i32) {
    %c0_i32 = arith.constant 0 : i32
    %c0_i32_0 = arith.constant 0 : i32
    return %arg0, %c0_i32 : i32, i32
  }
}

</mosaic_0001>

<llo_original>
// kernel: norlearner_forward.1
$region0: #{norlearner_forward.1}
  #allocation0 [shape = 'u32[]', space=smem, size = 0x4, offset = 0x4, fixed_abs, tag = 'smem constant byte address 0x4 - core index']
  #allocation1 [shape = 'u32[72,128]{1,0:T(1,128)}', space=vmem, size = 0x9000, scoped, tag = 'internal scratch']
  %s0 = inlined_call_operand.vmem [shape: f32[256,35], index: 0, kind: input, shape index: {}]
  %s1 = inlined_call_operand.vmem [shape: f32[3,36], index: 1, kind: input, shape index: {}]
  %s2 = inlined_call_operand.vmem [shape: f32[1,36], index: 2, kind: input, shape index: {}]
  %s3 = inlined_call_operand.vmem [shape: bf16[35,64], index: 3, kind: input, shape index: {}]
  %s4 = inlined_call_operand.vmem [shape: bf16[36,64], index: 4, kind: input, shape index: {}]
  %s5 = inlined_call_operand.vmem [shape: f32[1,64], index: 5, kind: input, shape index: {}]
  %s6 = inlined_call_operand.vmem [shape: bf16[64,3], index: 6, kind: input, shape index: {}]
  %s7 = inlined_call_operand.vmem [shape: f32[1,3], index: 7, kind: input, shape index: {}]
  %s8 = inlined_call_operand.vmem [shape: f32[256,3], index: 8, kind: output, shape index: {}]
  %s9 = sld [smem:[#allocation0]]
  $region65: #{norlearner_forward.1} parent=0
    _
  %s11 = ssub.s32 1, %s9
  %s12 = scalar_select 0, %s11, %s9
  loop: start=0, step=1, limit=6
  $region2: #{norlearner_forward.1} parent=0 // loop_pre_header
    _
  $region3: #{norlearner_forward.1} parent=0 // loop_header
    %s14 = sphi 0, %s18
    %p15 = scmp.ge.s32.totalorder %s14, 6
    %s24 = sphi 0, %s26
    %s27 = sphi 0, %s24
    %s28 = sphi 0, %s27
    %s44 = sphi 0, %s28
    %s48 = sphi 0, %s48
    %s50 = sphi 0, %s48
    %s51 = sphi 0, %s50
    %s65 = sphi 0, %s51
    %s69 = sphi 0, %s69
    %s71 = sphi 0, %s69
    %s72 = sphi 0, %s71
    %s86 = sphi 0, %s72
    %s90 = sphi 0, %s90
    %s92 = sphi 0, %s90
    %s93 = sphi 0, %s92
    %s107 = sphi 0, %s93
    %s111 = sphi 0, %s111
    %s113 = sphi 0, %s111
    %s114 = sphi 0, %s113
    %s128 = sphi 0, %s114
    %s132 = sphi 0, %s132
    %s134 = sphi 0, %s132
    %s135 = sphi 0, %s134
    %s149 = sphi 0, %s135
    %s153 = sphi 0, %s153
    %s155 = sphi 0, %s153
    %s156 = sphi 0, %s155
    %s170 = sphi 0, %s156
    %s174 = sphi 0, %s174
    %s176 = sphi 0, %s174
    %s177 = sphi 0, %s176
    %s191 = sphi 0, %s177
    %s197 = sphi 0, %s199
    %s200 = sphi 0, %s197
    %s201 = sphi 0, %s200
    %s217 = sphi 0, %s201
  $region4: #{norlearner_forward.1} parent=0 // loop_header_branch
    %17 = sbr.rel (%p15) target = $region8
  $region5: #{norlearner_forward.1} parent=0 // loop_body
    %s19 = ssub.s32 %s14, 1
    %s20 = ssub.s32 %s14, 2
    %s21 = sadd.s32 %s14, 1
    %s22 = ssub.s32 %s14, %s21
    %p23 = scmp.eq.s32.totalorder %s22, 0
    %s25 = sadd.s32 %s24, 1
    %s26 = scalar_select %p23, %s24, %s25
    %p29 = pneg %p23
    %p30 = scmp.eq.s32.totalorder %s14, 3
    %p31 = por %p29, %p30
    %p32 = scmp.ne.s32.totalorder %s24, %s27
    %p33 = scmp.eq.s32.totalorder %s14, 0
    %p34 = por %p32, %p33
    %p35 = scmp.ne.s32.totalorder %s24, %s27
    %p36 = scmp.eq.s32.totalorder %s19, 3
    %p37 = por %p35, %p36
    %p38 = scmp.ne.s32.totalorder %s27, %s28
    %p39 = scmp.eq.s32.totalorder %s19, 0
    %p40 = por %p38, %p39
    %p41 = scmp.ne.s32.totalorder %s27, %s28
    %p42 = scmp.eq.s32.totalorder %s20, 3
    %p43 = por %p41, %p42
    %p45 = scmp.ne.s32.totalorder %s28, %s44
    %p46 = scmp.eq.s32.totalorder %s20, 0
    %p47 = por %p45, %p46
    %s49 = sadd.s32 %s48, 1
    %p52 = scmp.eq.s32.totalorder %s14, 3
    %p53 = scmp.ne.s32.totalorder %s48, %s50
    %p54 = scmp.eq.s32.totalorder %s14, 0
    %p55 = por %p53, %p54
    %p56 = scmp.ne.s32.totalorder %s48, %s50
    %p57 = scmp.eq.s32.totalorder %s19, 3
    %p58 = por %p56, %p57
    %p59 = scmp.ne.s32.totalorder %s50, %s51
    %p60 = scmp.eq.s32.totalorder %s19, 0
    %p61 = por %p59, %p60
    %p62 = scmp.ne.s32.totalorder %s50, %s51
    %p63 = scmp.eq.s32.totalorder %s20, 3
    %p64 = por %p62, %p63
    %p66 = scmp.ne.s32.totalorder %s51, %s65
    %p67 = scmp.eq.s32.totalorder %s20, 0
    %p68 = por %p66, %p67
    %s70 = sadd.s32 %s69, 1
    %p73 = scmp.eq.s32.totalorder %s14, 3
    %p74 = scmp.ne.s32.totalorder %s69, %s71
    %p75 = scmp.eq.s32.totalorder %s14, 0
    %p76 = por %p74, %p75
    %p77 = scmp.ne.s32.totalorder %s69, %s71
    %p78 = scmp.eq.s32.totalorder %s19, 3
    %p79 = por %p77, %p78
    %p80 = scmp.ne.s32.totalorder %s71, %s72
    %p81 = scmp.eq.s32.totalorder %s19, 0
    %p82 = por %p80, %p81
    %p83 = scmp.ne.s32.totalorder %s71, %s72
    %p84 = scmp.eq.s32.totalorder %s20, 3
    %p85 = por %p83, %p84
    %p87 = scmp.ne.s32.totalorder %s72, %s86
    %p88 = scmp.eq.s32.totalorder %s20, 0
    %p89 = por %p87, %p88
    %s91 = sadd.s32 %s90, 1
    %p94 = scmp.eq.s32.totalorder %s14, 3
    %p95 = scmp.ne.s32.totalorder %s90, %s92
    %p96 = scmp.eq.s32.totalorder %s14, 0
    %p97 = por %p95, %p96
    %p98 = scmp.ne.s32.totalorder %s90, %s92
    %p99 = scmp.eq.s32.totalorder %s19, 3
    %p100 = por %p98, %p99
    %p101 = scmp.ne.s32.totalorder %s92, %s93
    %p102 = scmp.eq.s32.totalorder %s19, 0
    %p103 = por %p101, %p102
    %p104 = scmp.ne.s32.totalorder %s92, %s93
    %p105 = scmp.eq.s32.totalorder %s20, 3
    %p106 = por %p104, %p105
    %p108 = scmp.ne.s32.totalorder %s93, %s107
    %p109 = scmp.eq.s32.totalorder %s20, 0
    %p110 = por %p108, %p109
    %s112 = sadd.s32 %s111, 1
    %p115 = scmp.eq.s32.totalorder %s14, 3
    %p116 = scmp.ne.s32.totalorder %s111, %s113
    %p117 = scmp.eq.s32.totalorder %s14, 0
    %p118 = por %p116, %p117
    %p119 = scmp.ne.s32.totalorder %s111, %s113
    %p120 = scmp.eq.s32.totalorder %s19, 3
    %p121 = por %p119, %p120
    %p122 = scmp.ne.s32.totalorder %s113, %s114
    %p123 = scmp.eq.s32.totalorder %s19, 0
    %p124 = por %p122, %p123
    %p125 = scmp.ne.s32.totalorder %s113, %s114
    %p126 = scmp.eq.s32.totalorder %s20, 3
    %p127 = por %p125, %p126
    %p129 = scmp.ne.s32.totalorder %s114, %s128
    %p130 = scmp.eq.s32.totalorder %s20, 0
    %p131 = por %p129, %p130
    %s133 = sadd.s32 %s132, 1
    %p136 = scmp.eq.s32.totalorder %s14, 3
    %p137 = scmp.ne.s32.totalorder %s132, %s134
    %p138 = scmp.eq.s32.totalorder %s14, 0
    %p139 = por %p137, %p138
    %p140 = scmp.ne.s32.totalorder %s132, %s134
    %p141 = scmp.eq.s32.totalorder %s19, 3
    %p142 = por %p140, %p141
    %p143 = scmp.ne.s32.totalorder %s134, %s135
    %p144 = scmp.eq.s32.totalorder %s19, 0
    %p145 = por %p143, %p144
    %p146 = scmp.ne.s32.totalorder %s134, %s135
    %p147 = scmp.eq.s32.totalorder %s20, 3
    %p148 = por %p146, %p147
    %p150 = scmp.ne.s32.totalorder %s135, %s149
    %p151 = scmp.eq.s32.totalorder %s20, 0
    %p152 = por %p150, %p151
    %s154 = sadd.s32 %s153, 1
    %p157 = scmp.eq.s32.totalorder %s14, 3
    %p158 = scmp.ne.s32.totalorder %s153, %s155
    %p159 = scmp.eq.s32.totalorder %s14, 0
    %p160 = por %p158, %p159
    %p161 = scmp.ne.s32.totalorder %s153, %s155
    %p162 = scmp.eq.s32.totalorder %s19, 3
    %p163 = por %p161, %p162
    %p164 = scmp.ne.s32.totalorder %s155, %s156
    %p165 = scmp.eq.s32.totalorder %s19, 0
    %p166 = por %p164, %p165
    %p167 = scmp.ne.s32.totalorder %s155, %s156
    %p168 = scmp.eq.s32.totalorder %s20, 3
    %p169 = por %p167, %p168
    %p171 = scmp.ne.s32.totalorder %s156, %s170
    %p172 = scmp.eq.s32.totalorder %s20, 0
    %p173 = por %p171, %p172
    %s175 = sadd.s32 %s174, 1
    %p178 = scmp.eq.s32.totalorder %s14, 3
    %p179 = scmp.ne.s32.totalorder %s174, %s176
    %p180 = scmp.eq.s32.totalorder %s14, 0
    %p181 = por %p179, %p180
    %p182 = scmp.ne.s32.totalorder %s174, %s176
    %p183 = scmp.eq.s32.totalorder %s19, 3
    %p184 = por %p182, %p183
    %p185 = scmp.ne.s32.totalorder %s176, %s177
    %p186 = scmp.eq.s32.totalorder %s19, 0
    %p187 = por %p185, %p186
    %p188 = scmp.ne.s32.totalorder %s176, %s177
    %p189 = scmp.eq.s32.totalorder %s20, 3
    %p190 = por %p188, %p189
    %p192 = scmp.ne.s32.totalorder %s177, %s191
    %p193 = scmp.eq.s32.totalorder %s20, 0
    %p194 = por %p192, %p193
    %s195 = ssub.s32 %s14, %s21
    %p196 = scmp.eq.s32.totalorder %s195, 0
    %s198 = sadd.s32 %s197, 1
    %s199 = scalar_select %p196, %s197, %s198
    %p202 = pneg %p196
    %p203 = scmp.eq.s32.totalorder %s14, 3
    %p204 = por %p202, %p203
    %p205 = scmp.ne.s32.totalorder %s197, %s200
    %p206 = scmp.eq.s32.totalorder %s14, 0
    %p207 = por %p205, %p206
    %p208 = scmp.ne.s32.totalorder %s197, %s200
    %p209 = scmp.eq.s32.totalorder %s19, 3
    %p210 = por %p208, %p209
    %p211 = scmp.ne.s32.totalorder %s200, %s201
    %p212 = scmp.eq.s32.totalorder %s19, 0
    %p213 = por %p211, %p212
    %p214 = scmp.ne.s32.totalorder %s200, %s201
    %p215 = scmp.eq.s32.totalorder %s20, 3
    %p216 = por %p214, %p215
    %p218 = scmp.ne.s32.totalorder %s201, %s217
    %p219 = scmp.eq.s32.totalorder %s20, 0
    %p220 = por %p218, %p219
    %p221 = scmp.le.s32.totalorder 1, %s14
    %p222 = scmp.lt.s32.totalorder %s14, 5
    %p223 = pnand %p221, %p222
    %p224 = pneg %p223
    // Predicated region
    $region9: #{norlearner_forward.1} parent=5 // pred_check
      _
    $region10: #{norlearner_forward.1} parent=5 // pred_check_branch
      %226 = sbr.rel (%p223) target = $region12
    $region11: #{norlearner_forward.1} parent=5 // pred_region
      %s227 = ssub.s32 %s14, 1
      // Predicated region
      $region13: #{norlearner_forward.1} parent=11 // pred_check
        %p228 = pneg %p61
      $region14: #{norlearner_forward.1} parent=11 // pred_check_branch
        %230 = sbr.rel (%p228) target = $region16
      $region15: #{norlearner_forward.1} parent=11 // pred_region
        _
      $region16: #{norlearner_forward.1} parent=11 // pred_fallthru
        _
      // Predicated region
      $region17: #{norlearner_forward.1} parent=11 // pred_check
        %p231 = pneg %p82
      $region18: #{norlearner_forward.1} parent=11 // pred_check_branch
        %233 = sbr.rel (%p231) target = $region20
      $region19: #{norlearner_forward.1} parent=11 // pred_region
        _
      $region20: #{norlearner_forward.1} parent=11 // pred_fallthru
        _
      // Predicated region
      $region21: #{norlearner_forward.1} parent=11 // pred_check
        %p234 = pneg %p103
      $region22: #{norlearner_forward.1} parent=11 // pred_check_branch
        %236 = sbr.rel (%p234) target = $region24
      $region23: #{norlearner_forward.1} parent=11 // pred_region
        _
      $region24: #{norlearner_forward.1} parent=11 // pred_fallthru
        _
      // Predicated region
      $region25: #{norlearner_forward.1} parent=11 // pred_check
        %p237 = pneg %p124
      $region26: #{norlearner_forward.1} parent=11 // pred_check_branch
        %239 = sbr.rel (%p237) target = $region28
      $region27: #{norlearner_forward.1} parent=11 // pred_region
        _
      $region28: #{norlearner_forward.1} parent=11 // pred_fallthru
        _
      // Predicated region
      $region29: #{norlearner_forward.1} parent=11 // pred_check
        %p240 = pneg %p145
      $region30: #{norlearner_forward.1} parent=11 // pred_check_branch
        %242 = sbr.rel (%p240) target = $region32
      $region31: #{norlearner_forward.1} parent=11 // pred_region
        _
      $region32: #{norlearner_forward.1} parent=11 // pred_fallthru
        _
      // Predicated region
      $region33: #{norlearner_forward.1} parent=11 // pred_check
        %p243 = pneg %p166
      $region34: #{norlearner_forward.1} parent=11 // pred_check_branch
        %245 = sbr.rel (%p243) target = $region36
      $region35: #{norlearner_forward.1} parent=11 // pred_region
        _
      $region36: #{norlearner_forward.1} parent=11 // pred_fallthru
        _
      // Predicated region
      $region37: #{norlearner_forward.1} parent=11 // pred_check
        %p246 = pneg %p187
      $region38: #{norlearner_forward.1} parent=11 // pred_check_branch
        %248 = sbr.rel (%p246) target = $region40
      $region39: #{norlearner_forward.1} parent=11 // pred_region
        _
      $region40: #{norlearner_forward.1} parent=11 // pred_fallthru
        _
    $region12: #{norlearner_forward.1} parent=5 // pred_fallthru
      _
    %p249 = scmp.lt.s32.totalorder %s14, 4
    // Predicated region
    $region41: #{norlearner_forward.1} parent=5 // pred_check
      %p250 = pneg %p249
    $region42: #{norlearner_forward.1} parent=5 // pred_check_branch
      %252 = sbr.rel (%p250) target = $region44
    $region43: #{norlearner_forward.1} parent=5 // pred_region
      // Predicated region
      $region45: #{norlearner_forward.1} parent=43 // pred_check
        %p253 = pneg %p34
      $region46: #{norlearner_forward.1} parent=43 // pred_check_branch
        %255 = sbr.rel (%p253) target = $region48
      $region47: #{norlearner_forward.1} parent=43 // pred_region
        %s256 = smul.u32 8, %s14
        %p257 = scmp.lt.s32.totalorder %s256, 31
        %s258 = scalar_select %p257, %s256, 31
        %s259 = smul.addr %s258, 8
        %s260 = scalar_lea.vmem %s0, %s259
        %s261 = smul.u32 8, %s14
      $region48: #{norlearner_forward.1} parent=43 // pred_fallthru
        _
    $region44: #{norlearner_forward.1} parent=5 // pred_fallthru
      _
    %p262 = scmp.le.s32.totalorder 1, %s14
    %p263 = scmp.lt.s32.totalorder %s14, 5
    %p264 = pnand %p262, %p263
    %p265 = pneg %p264
    // Predicated region
    $region49: #{norlearner_forward.1} parent=5 // pred_check
      _
    $region50: #{norlearner_forward.1} parent=5 // pred_check_branch
      %267 = sbr.rel (%p264) target = $region52
    $region51: #{norlearner_forward.1} parent=5 // pred_region
      %s268 = ssub.s32 %s14, 1
      %s269 = smul.u32 8, %s19
      %p270 = scmp.lt.s32.totalorder %s269, 31
      %s271 = scalar_select %p270, %s269, 31
      %s272 = smul.addr %s271, 8
      %s273 = scalar_lea.vmem %s0, %s272
      %p274 = pneg %p40
      %p275 = pneg %p37
      %p276 = pneg %p61
      %p277 = pneg %p58
      %p278 = pneg %p82
      %p279 = pneg %p79
      %p280 = pneg %p103
      %p281 = pneg %p100
      %p282 = pneg %p124
      %p283 = pneg %p121
      %p284 = pneg %p145
      %p285 = pneg %p142
      %p286 = pneg %p166
      %p287 = pneg %p163
      %p288 = pneg %p187
      %p289 = pneg %p184
      %p290 = pneg %p213
      %p291 = pneg %p210
      %s292 = smul.u32 8, %s19
      %p293 = scmp.lt.s32.totalorder %s292, 31
      %s294 = scalar_select %p293, %s292, 31
      %s295 = smul.addr %s294, 8
      %s296 = scalar_lea.vmem %s8, %s295
      %s297 = smul.u32 8, %s19
      %p298 = scmp.lt.s32.totalorder %s297, 31
      %s299 = scalar_select %p298, %s297, 31
      %s300 = smul.addr %s299, 8
      %s301 = scalar_lea.vmem %s0, %s300
      %s302 = smul.u32 8, %s19
      %s303 = smul.u32 8, %s19
      %p304 = scmp.lt.s32.totalorder %s303, 31
      %s305 = scalar_select %p304, %s303, 31
      %s306 = smul.addr %s305, 8
      %s307 = scalar_lea.vmem %s8, %s306
      %s308 = smul.u32 8, %s19
      %v310 = vld [vmem:[%s301] sm:$0xff]
      %v311 = vld [vmem:[%s301 + $0x8] sm:$0xff]
      %v312 = vld [vmem:[%s301 + $0x10] sm:$0xff]
      %v313 = vld [vmem:[%s301 + $0x18] sm:$0xff]
      %v314 = vld [vmem:[%s301 + $0x20] sm:$0xff]
      %v315 = vld [vmem:[%s301 + $0x28] sm:$0xff]
      %v316 = vld [vmem:[%s301 + $0x30] sm:$0xff]
      %v317 = vld [vmem:[%s301 + $0x38] sm:$0xff]
      %v318 = vld [vmem:[%s1] sm:$0x7]
      %320 = vset.pattern.permute.xlu0 0
      %321 = vperm.xlu0 %320, %v310
      %v322 = vpop.permute.xlu0 %321
      %325 = vset.pattern.permute.xlu0 0
      %326 = vperm.xlu0 %325, %v311
      %v327 = vpop.permute.xlu0 %326
      %330 = vset.pattern.permute.xlu0 0
      %331 = vperm.xlu0 %330, %v312
      %v332 = vpop.permute.xlu0 %331
      %335 = vset.pattern.permute.xlu0 0
      %336 = vperm.xlu0 %335, %v313
      %v337 = vpop.permute.xlu0 %336
      %340 = vset.pattern.permute.xlu0 0
      %341 = vperm.xlu0 %340, %v314
      %v342 = vpop.permute.xlu0 %341
      %345 = vset.pattern.permute.xlu0 0
      %346 = vperm.xlu0 %345, %v315
      %v347 = vpop.permute.xlu0 %346
      %350 = vset.pattern.permute.xlu0 0
      %351 = vperm.xlu0 %350, %v316
      %v352 = vpop.permute.xlu0 %351
      %355 = vset.pattern.permute.xlu0 0
      %356 = vperm.xlu0 %355, %v317
      %v357 = vpop.permute.xlu0 %356
      %v359 = vperm.slane %v318, 0
      %v360 = vmul.f32 %v322, %v359
      %v361 = vmul.f32 %v327, %v359
      %v362 = vmul.f32 %v332, %v359
      %v363 = vmul.f32 %v337, %v359
      %v364 = vmul.f32 %v342, %v359
      %v365 = vmul.f32 %v347, %v359
      %v366 = vmul.f32 %v352, %v359
      %v367 = vmul.f32 %v357, %v359
      %368 = vset.pattern.permute.xlu0 1
      %369 = vperm.xlu0 %368, %v310
      %v370 = vpop.permute.xlu0 %369
      %372 = vset.pattern.permute.xlu0 1
      %373 = vperm.xlu0 %372, %v311
      %v374 = vpop.permute.xlu0 %373
      %376 = vset.pattern.permute.xlu0 1
      %377 = vperm.xlu0 %376, %v312
      %v378 = vpop.permute.xlu0 %377
      %380 = vset.pattern.permute.xlu0 1
      %381 = vperm.xlu0 %380, %v313
      %v382 = vpop.permute.xlu0 %381
      %384 = vset.pattern.permute.xlu0 1
      %385 = vperm.xlu0 %384, %v314
      %v386 = vpop.permute.xlu0 %385
      %388 = vset.pattern.permute.xlu0 1
      %389 = vperm.xlu0 %388, %v315
      %v390 = vpop.permute.xlu0 %389
      %392 = vset.pattern.permute.xlu0 1
      %393 = vperm.xlu0 %392, %v316
      %v394 = vpop.permute.xlu0 %393
      %396 = vset.pattern.permute.xlu0 1
      %397 = vperm.xlu0 %396, %v317
      %v398 = vpop.permute.xlu0 %397
      %v400 = vperm.slane %v318, 1
      %v401 = vmul.f32 %v370, %v400
      %v402 = vmul.f32 %v374, %v400
      %v403 = vmul.f32 %v378, %v400
      %v404 = vmul.f32 %v382, %v400
      %v405 = vmul.f32 %v386, %v400
      %v406 = vmul.f32 %v390, %v400
      %v407 = vmul.f32 %v394, %v400
      %v408 = vmul.f32 %v398, %v400
      %v409 = vadd.f32 %v360, %v401
      %v410 = vadd.f32 %v361, %v402
      %v411 = vadd.f32 %v362, %v403
      %v412 = vadd.f32 %v363, %v404
      %v413 = vadd.f32 %v364, %v405
      %v414 = vadd.f32 %v365, %v406
      %v415 = vadd.f32 %v366, %v407
      %v416 = vadd.f32 %v367, %v408
      %417 = vset.pattern.permute.xlu0 2
      %418 = vperm.xlu0 %417, %v310
      %v419 = vpop.permute.xlu0 %418
      %421 = vset.pattern.permute.xlu0 2
      %422 = vperm.xlu0 %421, %v311
      %v423 = vpop.permute.xlu0 %422
      %425 = vset.pattern.permute.xlu0 2
      %426 = vperm.xlu0 %425, %v312
      %v427 = vpop.permute.xlu0 %426
      %429 = vset.pattern.permute.xlu0 2
      %430 = vperm.xlu0 %429, %v313
      %v431 = vpop.permute.xlu0 %430
      %433 = vset.pattern.permute.xlu0 2
      %434 = vperm.xlu0 %433, %v314
      %v435 = vpop.permute.xlu0 %434
      %437 = vset.pattern.permute.xlu0 2
      %438 = vperm.xlu0 %437, %v315
      %v439 = vpop.permute.xlu0 %438
      %441 = vset.pattern.permute.xlu0 2
      %442 = vperm.xlu0 %441, %v316
      %v443 = vpop.permute.xlu0 %442
      %445 = vset.pattern.permute.xlu0 2
      %446 = vperm.xlu0 %445, %v317
      %v447 = vpop.permute.xlu0 %446
      %v449 = vperm.slane %v318, 2
      %v450 = vmul.f32 %v419, %v449
      %v451 = vmul.f32 %v423, %v449
      %v452 = vmul.f32 %v427, %v449
      %v453 = vmul.f32 %v431, %v449
      %v454 = vmul.f32 %v435, %v449
      %v455 = vmul.f32 %v439, %v449
      %v456 = vmul.f32 %v443, %v449
      %v457 = vmul.f32 %v447, %v449
      %v458 = vadd.f32 %v409, %v450
      %v459 = vadd.f32 %v410, %v451
      %v460 = vadd.f32 %v411, %v452
      %v461 = vadd.f32 %v412, %v453
      %v462 = vadd.f32 %v413, %v454
      %v463 = vadd.f32 %v414, %v455
      %v464 = vadd.f32 %v415, %v456
      %v465 = vadd.f32 %v416, %v457
      %v466 = vld [vmem:[%s2] sm:$0x1]
      %v468 = vperm.slane %v466, 0
      %v470 = vadd.f32 %v458, %v468
      %v471 = vadd.f32 %v459, %v468
      %v472 = vadd.f32 %v460, %v468
      %v473 = vadd.f32 %v461, %v468
      %v474 = vadd.f32 %v462, %v468
      %v475 = vadd.f32 %v463, %v468
      %v476 = vadd.f32 %v464, %v468
      %v477 = vadd.f32 %v465, %v468
      %v478 = vand.u32 2147483647, %v470
      %vm479 = vcmp.le.f32.partialorder %v478, 0.7853982
      %vm480 = vcmp.lt.s32.totalorder %v470, 0
      %v481 = vand.u32 %v470, 2139095040
      %v482 = vshrl.u32 %v481, 23
      %v483 = vsub.s32 %v482, 127
      %v484 = vand.u32 2147483647, %v470
      %v485 = vand.u32 %v484, 8388607
      %v486 = vor.u32 %v485, 8388608
      %v487 = vsub.s32 0, %v486
      %v488 = vadd.s32 %v483, 1
      %vm489 = vcmp.gt.s32.totalorder %v488, 0
      %v490 = vsel %vm489, %v488, 0
      %v491 = vshrl.u32 %v490, 5
      %v492 = vand.u32 %v490, 31
      %v493 = vsub.s32 32, %v492
      %v494 = vshrl.u32 683565275, %v493
      %v495 = vshll.u32 683565275, %v492
      %v496 = vshrl.u32 2475754826, %v493
      %v497 = vor.u32 %v495, %v496
      %v498 = vshll.u32 2475754826, %v492
      %v499 = vshrl.u32 2131351028, %v493
      %v500 = vor.u32 %v498, %v499
      %v501 = vshll.u32 2131351028, %v492
      %v502 = vshrl.u32 2102212464, %v493
      %v503 = vor.u32 %v501, %v502
      %v504 = vshll.u32 2102212464, %v492
      %v505 = vshrl.u32 920167782, %v493
      %v506 = vor.u32 %v504, %v505
      %v507 = vshll.u32 920167782, %v492
      %v508 = vshrl.u32 1326507024, %v493
      %v509 = vor.u32 %v507, %v508
      %vm510 = vcmp.lt.s32.totalorder %v491, 1
      %vm511 = vcmp.lt.s32.totalorder %v491, 2
      %vm512 = vcmp.lt.s32.totalorder %v491, 3
      %vm513 = vcmp.lt.s32.totalorder %v491, 4
      %v514 = vsel %vm510, %v494, %v497
      %v515 = vsel %vm513, %v503, 2102212464
      %v516 = vsel %vm512, %v500, %v515
      %v517 = vsel %vm511, %v514, %v516
      %v518 = vsel %vm510, %v497, %v500
      %v519 = vsel %vm513, %v506, 920167782
      %v520 = vsel %vm512, %v503, %v519
      %v521 = vsel %vm511, %v518, %v520
      %v522 = vsel %vm510, %v500, %v503
      %v523 = vsel %vm513, %v509, 1326507024
      %v524 = vsel %vm512, %v506, %v523
      %v525 = vsel %vm511, %v522, %v524
      %v526 = vshll.u32 %v486, 8
      %v527 = vand.u32 %v526, 65535
      %v528 = vshrl.u32 %v526, 16
      %v529 = vand.u32 %v525, 65535
      %v530 = vshrl.u32 %v525, 16
      %v531 = vmul.u32 %v527, %v529
      %v532 = vmul.u32 %v527, %v530
      %v533 = vmul.u32 %v528, %v529
      %v534 = vmul.u32 %v528, %v530
      %v535 = vshll.u32 %v532, 16
      %v536 = vshrl.u32 %v532, 16
      %v537 = vshll.u32 %v533, 16
      %v538 = vshrl.u32 %v533, 16
      %vm539 = vc.u32 %v531, %v535
      %v540 = vsel %vm539, 1, 0
      %v541 = vadd.s32 %v531, %v535
      %v542 = vadd.s32 %v534, %v540
      %vm543 = vc.u32 %v541, %v537
      %v544 = vsel %vm543, 1, 0
      %v545 = vadd.s32 %v541, %v537
      %v546 = vadd.s32 %v542, %v544
      %v547 = vadd.s32 %v546, %v536
      %v548 = vadd.s32 %v547, %v538
      %v549 = vand.u32 %v526, 65535
      %v550 = vshrl.u32 %v526, 16
      %v551 = vand.u32 %v521, 65535
      %v552 = vshrl.u32 %v521, 16
      %v553 = vmul.u32 %v549, %v551
      %v554 = vmul.u32 %v549, %v552
      %v555 = vmul.u32 %v550, %v551
      %v556 = vmul.u32 %v550, %v552
      %v557 = vshll.u32 %v554, 16
      %v558 = vshrl.u32 %v554, 16
      %v559 = vshll.u32 %v555, 16
      %v560 = vshrl.u32 %v555, 16
      %vm561 = vc.u32 %v553, %v557
      %v562 = vsel %vm561, 1, 0
      %v563 = vadd.s32 %v553, %v557
      %v564 = vadd.s32 %v556, %v562
      %vm565 = vc.u32 %v563, %v559
      %v566 = vsel %vm565, 1, 0
      %v567 = vadd.s32 %v563, %v559
      %v568 = vadd.s32 %v564, %v566
      %v569 = vadd.s32 %v568, %v558
      %v570 = vadd.s32 %v569, %v560
      %v571 = vmul.u32 %v526, %v517
      %v572 = vadd.s32 %v548, %v567
      %vm573 = vc.u32 %v548, %v567
      %v574 = vadd.s32 %v570, 1
      %v575 = vsel %vm573, %v574, %v570
      %v576 = vadd.s32 %v571, %v575
      %v577 = vadd.s32 %v576, 536870912
      %v578 = vshrl.u32 %v577, 30
      %v579 = vshll.u32 %v578, 30
      %v580 = vsub.s32 %v576, %v579
      %vm581 = vcmp.lt.s32.totalorder %v580, 0
      %v582 = vsub.s32 0, %v580
      %v583 = vsel %vm581, %v582, %v580
      %v584 = vclz %v583
      %v585 = vsub.s32 %v584, 2
      %vm586 = vcmp.gt.s32.totalorder 0, %v585
      %v587 = vsel %vm586, 0, %v585
      %v588 = vsub.s32 32, %v587
      %v589 = vshll.u32 %v580, %v587
      %v590 = vshrl.u32 %v572, %v588
      %v591 = vor.u32 %v589, %v590
      %v592 = vsub.s32 4294967266, %v587
      %v593 = vadd.s32 %v592, 127
      %v594 = vshll.u32 %v593, 23
      %v595 = vor.u32 4788187, %v594
      %v596 = vand.u32 2147483647, %v595
      %v598 = vcvt.s32.f32 %v591
      %v599 = vmul.f32 %v598, %v596
      %v600 = vxor.u32 %v599, 2147483648
      %v601 = vsel %vm480, %v600, %v599
      %v602 = vsub.s32 4, %v578
      %v603 = vsel %vm480, %v602, %v578
      %v604 = vsel %vm479, %v470, %v601
      %v605 = vsel %vm479, 0, %v603
      %v606 = vmul.f32 %v604, %v604
      %v607 = vmul.f32 %v606, -0.001358992
      %v608 = vadd.f32 %v607, 0.041655596
      %v609 = vmul.f32 %v606, %v608
      %v610 = vadd.f32 %v609, -0.4999988
      %v611 = vmul.f32 %v606, %v610
      %v612 = vadd.f32 1.0, %v611
      %v613 = vmul.f32 %v604, %v604
      %v614 = vmul.f32 %v613, -0.00019511016
      %v615 = vadd.f32 %v614, 0.008332121
      %v616 = vmul.f32 %v613, %v615
      %v617 = vadd.f32 %v616, -0.16666654
      %v618 = vmul.f32 %v613, %v617
      %v619 = vadd.f32 %v618, 1.0
      %v620 = vmul.f32 %v619, %v604
      %vm621 = vweird.f32 %v470
      %v622 = vadd.s32 %v605, 3
      %v623 = vand.u32 %v622, 3
      %vm624 = vcmp.lt.s32.totalorder %v623, 2
      %vm625 = vcmp.eq.s32.totalorder %v623, 0
      %v626 = vxor.u32 %v620, 2147483648
      %v627 = vsel %vm625, %v612, %v626
      %vm628 = vcmp.eq.s32.totalorder %v623, 2
      %v629 = vxor.u32 %v612, 2147483648
      %v630 = vsel %vm628, %v629, %v620
      %v631 = vsel %vm624, %v627, %v630
      %v632 = vsel %vm621, nan, %v631
      %v633 = vand.u32 2147483647, %v471
      %vm634 = vcmp.le.f32.partialorder %v633, 0.7853982
      %vm635 = vcmp.lt.s32.totalorder %v471, 0
      %v636 = vand.u32 %v471, 2139095040
      %v637 = vshrl.u32 %v636, 23
      %v638 = vsub.s32 %v637, 127
      %v639 = vand.u32 2147483647, %v471
      %v640 = vand.u32 %v639, 8388607
      %v641 = vor.u32 %v640, 8388608
      %v642 = vsub.s32 0, %v641
      %v643 = vadd.s32 %v638, 1
      %vm644 = vcmp.gt.s32.totalorder %v643, 0
      %v645 = vsel %vm644, %v643, 0
      %v646 = vshrl.u32 %v645, 5
      %v647 = vand.u32 %v645, 31
      %v648 = vsub.s32 32, %v647
      %v649 = vshrl.u32 683565275, %v648
      %v650 = vshll.u32 683565275, %v647
      %v651 = vshrl.u32 2475754826, %v648
      %v652 = vor.u32 %v650, %v651
      %v653 = vshll.u32 2475754826, %v647
      %v654 = vshrl.u32 2131351028, %v648
      %v655 = vor.u32 %v653, %v654
      %v656 = vshll.u32 2131351028, %v647
      %v657 = vshrl.u32 2102212464, %v648
      %v658 = vor.u32 %v656, %v657
      %v659 = vshll.u32 2102212464, %v647
      %v660 = vshrl.u32 920167782, %v648
      %v661 = vor.u32 %v659, %v660
      %v662 = vshll.u32 920167782, %v647
      %v663 = vshrl.u32 1326507024, %v648
      %v664 = vor.u32 %v662, %v663
      %vm665 = vcmp.lt.s32.totalorder %v646, 1
      %vm666 = vcmp.lt.s32.totalorder %v646, 2
      %vm667 = vcmp.lt.s32.totalorder %v646, 3
      %vm668 = vcmp.lt.s32.totalorder %v646, 4
      %v669 = vsel %vm665, %v649, %v652
      %v670 = vsel %vm668, %v658, 2102212464
      %v671 = vsel %vm667, %v655, %v670
      %v672 = vsel %vm666, %v669, %v671
      %v673 = vsel %vm665, %v652, %v655
      %v674 = vsel %vm668, %v661, 920167782
      %v675 = vsel %vm667, %v658, %v674
      %v676 = vsel %vm666, %v673, %v675
      %v677 = vsel %vm665, %v655, %v658
      %v678 = vsel %vm668, %v664, 1326507024
      %v679 = vsel %vm667, %v661, %v678
      %v680 = vsel %vm666, %v677, %v679
      %v681 = vshll.u32 %v641, 8
      %v682 = vand.u32 %v681, 65535
      %v683 = vshrl.u32 %v681, 16
      %v684 = vand.u32 %v680, 65535
      %v685 = vshrl.u32 %v680, 16
      %v686 = vmul.u32 %v682, %v684
      %v687 = vmul.u32 %v682, %v685
      %v688 = vmul.u32 %v683, %v684
      %v689 = vmul.u32 %v683, %v685
      %v690 = vshll.u32 %v687, 16
      %v691 = vshrl.u32 %v687, 16
      %v692 = vshll.u32 %v688, 16
      %v693 = vshrl.u32 %v688, 16
      %vm694 = vc.u32 %v686, %v690
      %v695 = vsel %vm694, 1, 0
      %v696 = vadd.s32 %v686, %v690
      %v697 = vadd.s32 %v689, %v695
      %vm698 = vc.u32 %v696, %v692
      %v699 = vsel %vm698, 1, 0
      %v700 = vadd.s32 %v696, %v692
      %v701 = vadd.s32 %v697, %v699
      %v702 = vadd.s32 %v701, %v691
      %v703 = vadd.s32 %v702, %v693
      %v704 = vand.u32 %v681, 65535
      %v705 = vshrl.u32 %v681, 16
      %v706 = vand.u32 %v676, 65535
      %v707 = vshrl.u32 %v676, 16
      %v708 = vmul.u32 %v704, %v706
      %v709 = vmul.u32 %v704, %v707
      %v710 = vmul.u32 %v705, %v706
      %v711 = vmul.u32 %v705, %v707
      %v712 = vshll.u32 %v709, 16
      %v713 = vshrl.u32 %v709, 16
      %v714 = vshll.u32 %v710, 16
      %v715 = vshrl.u32 %v710, 16
      %vm716 = vc.u32 %v708, %v712
      %v717 = vsel %vm716, 1, 0
      %v718 = vadd.s32 %v708, %v712
      %v719 = vadd.s32 %v711, %v717
      %vm720 = vc.u32 %v718, %v714
      %v721 = vsel %vm720, 1, 0
      %v722 = vadd.s32 %v718, %v714
      %v723 = vadd.s32 %v719, %v721
      %v724 = vadd.s32 %v723, %v713
      %v725 = vadd.s32 %v724, %v715
      %v726 = vmul.u32 %v681, %v672
      %v727 = vadd.s32 %v703, %v722
      %vm728 = vc.u32 %v703, %v722
      %v729 = vadd.s32 %v725, 1
      %v730 = vsel %vm728, %v729, %v725
      %v731 = vadd.s32 %v726, %v730
      %v732 = vadd.s32 %v731, 536870912
      %v733 = vshrl.u32 %v732, 30
      %v734 = vshll.u32 %v733, 30
      %v735 = vsub.s32 %v731, %v734
      %vm736 = vcmp.lt.s32.totalorder %v735, 0
      %v737 = vsub.s32 0, %v735
      %v738 = vsel %vm736, %v737, %v735
      %v739 = vclz %v738
      %v740 = vsub.s32 %v739, 2
      %vm741 = vcmp.gt.s32.totalorder 0, %v740
      %v742 = vsel %vm741, 0, %v740
      %v743 = vsub.s32 32, %v742
      %v744 = vshll.u32 %v735, %v742
      %v745 = vshrl.u32 %v727, %v743
      %v746 = vor.u32 %v744, %v745
      %v747 = vsub.s32 4294967266, %v742
      %v748 = vadd.s32 %v747, 127
      %v749 = vshll.u32 %v748, 23
      %v750 = vor.u32 4788187, %v749
      %v751 = vand.u32 2147483647, %v750
      %v753 = vcvt.s32.f32 %v746
      %v754 = vmul.f32 %v753, %v751
      %v755 = vxor.u32 %v754, 2147483648
      %v756 = vsel %vm635, %v755, %v754
      %v757 = vsub.s32 4, %v733
      %v758 = vsel %vm635, %v757, %v733
      %v759 = vsel %vm634, %v471, %v756
      %v760 = vsel %vm634, 0, %v758
      %v761 = vmul.f32 %v759, %v759
      %v762 = vmul.f32 %v761, -0.001358992
      %v763 = vadd.f32 %v762, 0.041655596
      %v764 = vmul.f32 %v761, %v763
      %v765 = vadd.f32 %v764, -0.4999988
      %v766 = vmul.f32 %v761, %v765
      %v767 = vadd.f32 1.0, %v766
      %v768 = vmul.f32 %v759, %v759
      %v769 = vmul.f32 %v768, -0.00019511016
      %v770 = vadd.f32 %v769, 0.008332121
      %v771 = vmul.f32 %v768, %v770
      %v772 = vadd.f32 %v771, -0.16666654
      %v773 = vmul.f32 %v768, %v772
      %v774 = vadd.f32 %v773, 1.0
      %v775 = vmul.f32 %v774, %v759
      %vm776 = vweird.f32 %v471
      %v777 = vadd.s32 %v760, 3
      %v778 = vand.u32 %v777, 3
      %vm779 = vcmp.lt.s32.totalorder %v778, 2
      %vm780 = vcmp.eq.s32.totalorder %v778, 0
      %v781 = vxor.u32 %v775, 2147483648
      %v782 = vsel %vm780, %v767, %v781
      %vm783 = vcmp.eq.s32.totalorder %v778, 2
      %v784 = vxor.u32 %v767, 2147483648
      %v785 = vsel %vm783, %v784, %v775
      %v786 = vsel %vm779, %v782, %v785
      %v787 = vsel %vm776, nan, %v786
      %v788 = vand.u32 2147483647, %v472
      %vm789 = vcmp.le.f32.partialorder %v788, 0.7853982
      %vm790 = vcmp.lt.s32.totalorder %v472, 0
      %v791 = vand.u32 %v472, 2139095040
      %v792 = vshrl.u32 %v791, 23
      %v793 = vsub.s32 %v792, 127
      %v794 = vand.u32 2147483647, %v472
      %v795 = vand.u32 %v794, 8388607
      %v796 = vor.u32 %v795, 8388608
      %v797 = vsub.s32 0, %v796
      %v798 = vadd.s32 %v793, 1
      %vm799 = vcmp.gt.s32.totalorder %v798, 0
      %v800 = vsel %vm799, %v798, 0
      %v801 = vshrl.u32 %v800, 5
      %v802 = vand.u32 %v800, 31
      %v803 = vsub.s32 32, %v802
      %v804 = vshrl.u32 683565275, %v803
      %v805 = vshll.u32 683565275, %v802
      %v806 = vshrl.u32 2475754826, %v803
      %v807 = vor.u32 %v805, %v806
      %v808 = vshll.u32 2475754826, %v802
      %v809 = vshrl.u32 2131351028, %v803
      %v810 = vor.u32 %v808, %v809
      %v811 = vshll.u32 2131351028, %v802
      %v812 = vshrl.u32 2102212464, %v803
      %v813 = vor.u32 %v811, %v812
      %v814 = vshll.u32 2102212464, %v802
      %v815 = vshrl.u32 920167782, %v803
      %v816 = vor.u32 %v814, %v815
      %v817 = vshll.u32 920167782, %v802
      %v818 = vshrl.u32 1326507024, %v803
      %v819 = vor.u32 %v817, %v818
      %vm820 = vcmp.lt.s32.totalorder %v801, 1
      %vm821 = vcmp.lt.s32.totalorder %v801, 2
      %vm822 = vcmp.lt.s32.totalorder %v801, 3
      %vm823 = vcmp.lt.s32.totalorder %v801, 4
      %v824 = vsel %vm820, %v804, %v807
      %v825 = vsel %vm823, %v813, 2102212464
      %v826 = vsel %vm822, %v810, %v825
      %v827 = vsel %vm821, %v824, %v826
      %v828 = vsel %vm820, %v807, %v810
      %v829 = vsel %vm823, %v816, 920167782
      %v830 = vsel %vm822, %v813, %v829
      %v831 = vsel %vm821, %v828, %v830
      %v832 = vsel %vm820, %v810, %v813
      %v833 = vsel %vm823, %v819, 1326507024
      %v834 = vsel %vm822, %v816, %v833
      %v835 = vsel %vm821, %v832, %v834
      %v836 = vshll.u32 %v796, 8
      %v837 = vand.u32 %v836, 65535
      %v838 = vshrl.u32 %v836, 16
      %v839 = vand.u32 %v835, 65535
      %v840 = vshrl.u32 %v835, 16
      %v841 = vmul.u32 %v837, %v839
      %v842 = vmul.u32 %v837, %v840
      %v843 = vmul.u32 %v838, %v839
      %v844 = vmul.u32 %v838, %v840
      %v845 = vshll.u32 %v842, 16
      %v846 = vshrl.u32 %v842, 16
      %v847 = vshll.u32 %v843, 16
      %v848 = vshrl.u32 %v843, 16
      %vm849 = vc.u32 %v841, %v845
      %v850 = vsel %vm849, 1, 0
      %v851 = vadd.s32 %v841, %v845
      %v852 = vadd.s32 %v844, %v850
      %vm853 = vc.u32 %v851, %v847
      %v854 = vsel %vm853, 1, 0
      %v855 = vadd.s32 %v851, %v847
      %v856 = vadd.s32 %v852, %v854
      %v857 = vadd.s32 %v856, %v846
      %v858 = vadd.s32 %v857, %v848
      %v859 = vand.u32 %v836, 65535
      %v860 = vshrl.u32 %v836, 16
      %v861 = vand.u32 %v831, 65535
      %v862 = vshrl.u32 %v831, 16
      %v863 = vmul.u32 %v859, %v861
      %v864 = vmul.u32 %v859, %v862
      %v865 = vmul.u32 %v860, %v861
      %v866 = vmul.u32 %v860, %v862
      %v867 = vshll.u32 %v864, 16
      %v868 = vshrl.u32 %v864, 16
      %v869 = vshll.u32 %v865, 16
      %v870 = vshrl.u32 %v865, 16
      %vm871 = vc.u32 %v863, %v867
      %v872 = vsel %vm871, 1, 0
      %v873 = vadd.s32 %v863, %v867
      %v874 = vadd.s32 %v866, %v872
      %vm875 = vc.u32 %v873, %v869
      %v876 = vsel %vm875, 1, 0
      %v877 = vadd.s32 %v873, %v869
      %v878 = vadd.s32 %v874, %v876
      %v879 = vadd.s32 %v878, %v868
      %v880 = vadd.s32 %v879, %v870
      %v881 = vmul.u32 %v836, %v827
      %v882 = vadd.s32 %v858, %v877
      %vm883 = vc.u32 %v858, %v877
      %v884 = vadd.s32 %v880, 1
      %v885 = vsel %vm883, %v884, %v880
      %v886 = vadd.s32 %v881, %v885
      %v887 = vadd.s32 %v886, 536870912
      %v888 = vshrl.u32 %v887, 30
      %v889 = vshll.u32 %v888, 30
      %v890 = vsub.s32 %v886, %v889
      %vm891 = vcmp.lt.s32.totalorder %v890, 0
      %v892 = vsub.s32 0, %v890
      %v893 = vsel %vm891, %v892, %v890
      %v894 = vclz %v893
      %v895 = vsub.s32 %v894, 2
      %vm896 = vcmp.gt.s32.totalorder 0, %v895
      %v897 = vsel %vm896, 0, %v895
      %v898 = vsub.s32 32, %v897
      %v899 = vshll.u32 %v890, %v897
      %v900 = vshrl.u32 %v882, %v898
      %v901 = vor.u32 %v899, %v900
      %v902 = vsub.s32 4294967266, %v897
      %v903 = vadd.s32 %v902, 127
      %v904 = vshll.u32 %v903, 23
      %v905 = vor.u32 4788187, %v904
      %v906 = vand.u32 2147483647, %v905
      %v908 = vcvt.s32.f32 %v901
      %v909 = vmul.f32 %v908, %v906
      %v910 = vxor.u32 %v909, 2147483648
      %v911 = vsel %vm790, %v910, %v909
      %v912 = vsub.s32 4, %v888
      %v913 = vsel %vm790, %v912, %v888
      %v914 = vsel %vm789, %v472, %v911
      %v915 = vsel %vm789, 0, %v913
      %v916 = vmul.f32 %v914, %v914
      %v917 = vmul.f32 %v916, -0.001358992
      %v918 = vadd.f32 %v917, 0.041655596
      %v919 = vmul.f32 %v916, %v918
      %v920 = vadd.f32 %v919, -0.4999988
      %v921 = vmul.f32 %v916, %v920
      %v922 = vadd.f32 1.0, %v921
      %v923 = vmul.f32 %v914, %v914
      %v924 = vmul.f32 %v923, -0.00019511016
      %v925 = vadd.f32 %v924, 0.008332121
      %v926 = vmul.f32 %v923, %v925
      %v927 = vadd.f32 %v926, -0.16666654
      %v928 = vmul.f32 %v923, %v927
      %v929 = vadd.f32 %v928, 1.0
      %v930 = vmul.f32 %v929, %v914
      %vm931 = vweird.f32 %v472
      %v932 = vadd.s32 %v915, 3
      %v933 = vand.u32 %v932, 3
      %vm934 = vcmp.lt.s32.totalorder %v933, 2
      %vm935 = vcmp.eq.s32.totalorder %v933, 0
      %v936 = vxor.u32 %v930, 2147483648
      %v937 = vsel %vm935, %v922, %v936
      %vm938 = vcmp.eq.s32.totalorder %v933, 2
      %v939 = vxor.u32 %v922, 2147483648
      %v940 = vsel %vm938, %v939, %v930
      %v941 = vsel %vm934, %v937, %v940
      %v942 = vsel %vm931, nan, %v941
      %v943 = vand.u32 2147483647, %v473
      %vm944 = vcmp.le.f32.partialorder %v943, 0.7853982
      %vm945 = vcmp.lt.s32.totalorder %v473, 0
      %v946 = vand.u32 %v473, 2139095040
      %v947 = vshrl.u32 %v946, 23
      %v948 = vsub.s32 %v947, 127
      %v949 = vand.u32 2147483647, %v473
      %v950 = vand.u32 %v949, 8388607
      %v951 = vor.u32 %v950, 8388608
      %v952 = vsub.s32 0, %v951
      %v953 = vadd.s32 %v948, 1
      %vm954 = vcmp.gt.s32.totalorder %v953, 0
      %v955 = vsel %vm954, %v953, 0
      %v956 = vshrl.u32 %v955, 5
      %v957 = vand.u32 %v955, 31
      %v958 = vsub.s32 32, %v957
      %v959 = vshrl.u32 683565275, %v958
      %v960 = vshll.u32 683565275, %v957
      %v961 = vshrl.u32 2475754826, %v958
      %v962 = vor.u32 %v960, %v961
      %v963 = vshll.u32 2475754826, %v957
      %v964 = vshrl.u32 2131351028, %v958
      %v965 = vor.u32 %v963, %v964
      %v966 = vshll.u32 2131351028, %v957
      %v967 = vshrl.u32 2102212464, %v958
      %v968 = vor.u32 %v966, %v967
      %v969 = vshll.u32 2102212464, %v957
      %v970 = vshrl.u32 920167782, %v958
      %v971 = vor.u32 %v969, %v970
      %v972 = vshll.u32 920167782, %v957
      %v973 = vshrl.u32 1326507024, %v958
      %v974 = vor.u32 %v972, %v973
      %vm975 = vcmp.lt.s32.totalorder %v956, 1
      %vm976 = vcmp.lt.s32.totalorder %v956, 2
      %vm977 = vcmp.lt.s32.totalorder %v956, 3
      %vm978 = vcmp.lt.s32.totalorder %v956, 4
      %v979 = vsel %vm975, %v959, %v962
      %v980 = vsel %vm978, %v968, 2102212464
      %v981 = vsel %vm977, %v965, %v980
      %v982 = vsel %vm976, %v979, %v981
      %v983 = vsel %vm975, %v962, %v965
      %v984 = vsel %vm978, %v971, 920167782
      %v985 = vsel %vm977, %v968, %v984
      %v986 = vsel %vm976, %v983, %v985
      %v987 = vsel %vm975, %v965, %v968
      %v988 = vsel %vm978, %v974, 1326507024
      %v989 = vsel %vm977, %v971, %v988
      %v990 = vsel %vm976, %v987, %v989
      %v991 = vshll.u32 %v951, 8
      %v992 = vand.u32 %v991, 65535
      %v993 = vshrl.u32 %v991, 16
      %v994 = vand.u32 %v990, 65535
      %v995 = vshrl.u32 %v990, 16
      %v996 = vmul.u32 %v992, %v994
      %v997 = vmul.u32 %v992, %v995
      %v998 = vmul.u32 %v993, %v994
      %v999 = vmul.u32 %v993, %v995
      %v1000 = vshll.u32 %v997, 16
      %v1001 = vshrl.u32 %v997, 16
      %v1002 = vshll.u32 %v998, 16
      %v1003 = vshrl.u32 %v998, 16
      %vm1004 = vc.u32 %v996, %v1000
      %v1005 = vsel %vm1004, 1, 0
      %v1006 = vadd.s32 %v996, %v1000
      %v1007 = vadd.s32 %v999, %v1005
      %vm1008 = vc.u32 %v1006, %v1002
      %v1009 = vsel %vm1008, 1, 0
      %v1010 = vadd.s32 %v1006, %v1002
      %v1011 = vadd.s32 %v1007, %v1009
      %v1012 = vadd.s32 %v1011, %v1001
      %v1013 = vadd.s32 %v1012, %v1003
      %v1014 = vand.u32 %v991, 65535
      %v1015 = vshrl.u32 %v991, 16
      %v1016 = vand.u32 %v986, 65535
      %v1017 = vshrl.u32 %v986, 16
      %v1018 = vmul.u32 %v1014, %v1016
      %v1019 = vmul.u32 %v1014, %v1017
      %v1020 = vmul.u32 %v1015, %v1016
      %v1021 = vmul.u32 %v1015, %v1017
      %v1022 = vshll.u32 %v1019, 16
      %v1023 = vshrl.u32 %v1019, 16
      %v1024 = vshll.u32 %v1020, 16
      %v1025 = vshrl.u32 %v1020, 16
      %vm1026 = vc.u32 %v1018, %v1022
      %v1027 = vsel %vm1026, 1, 0
      %v1028 = vadd.s32 %v1018, %v1022
      %v1029 = vadd.s32 %v1021, %v1027
      %vm1030 = vc.u32 %v1028, %v1024
      %v1031 = vsel %vm1030, 1, 0
      %v1032 = vadd.s32 %v1028, %v1024
      %v1033 = vadd.s32 %v1029, %v1031
      %v1034 = vadd.s32 %v1033, %v1023
      %v1035 = vadd.s32 %v1034, %v1025
      %v1036 = vmul.u32 %v991, %v982
      %v1037 = vadd.s32 %v1013, %v1032
      %vm1038 = vc.u32 %v1013, %v1032
      %v1039 = vadd.s32 %v1035, 1
      %v1040 = vsel %vm1038, %v1039, %v1035
      %v1041 = vadd.s32 %v1036, %v1040
      %v1042 = vadd.s32 %v1041, 536870912
      %v1043 = vshrl.u32 %v1042, 30
      %v1044 = vshll.u32 %v1043, 30
      %v1045 = vsub.s32 %v1041, %v1044
      %vm1046 = vcmp.lt.s32.totalorder %v1045, 0
      %v1047 = vsub.s32 0, %v1045
      %v1048 = vsel %vm1046, %v1047, %v1045
      %v1049 = vclz %v1048
      %v1050 = vsub.s32 %v1049, 2
      %vm1051 = vcmp.gt.s32.totalorder 0, %v1050
      %v1052 = vsel %vm1051, 0, %v1050
      %v1053 = vsub.s32 32, %v1052
      %v1054 = vshll.u32 %v1045, %v1052
      %v1055 = vshrl.u32 %v1037, %v1053
      %v1056 = vor.u32 %v1054, %v1055
      %v1057 = vsub.s32 4294967266, %v1052
      %v1058 = vadd.s32 %v1057, 127
      %v1059 = vshll.u32 %v1058, 23
      %v1060 = vor.u32 4788187, %v1059
      %v1061 = vand.u32 2147483647, %v1060
      %v1063 = vcvt.s32.f32 %v1056
      %v1064 = vmul.f32 %v1063, %v1061
      %v1065 = vxor.u32 %v1064, 2147483648
      %v1066 = vsel %vm945, %v1065, %v1064
      %v1067 = vsub.s32 4, %v1043
      %v1068 = vsel %vm945, %v1067, %v1043
      %v1069 = vsel %vm944, %v473, %v1066
      %v1070 = vsel %vm944, 0, %v1068
      %v1071 = vmul.f32 %v1069, %v1069
      %v1072 = vmul.f32 %v1071, -0.001358992
      %v1073 = vadd.f32 %v1072, 0.041655596
      %v1074 = vmul.f32 %v1071, %v1073
      %v1075 = vadd.f32 %v1074, -0.4999988
      %v1076 = vmul.f32 %v1071, %v1075
      %v1077 = vadd.f32 1.0, %v1076
      %v1078 = vmul.f32 %v1069, %v1069
      %v1079 = vmul.f32 %v1078, -0.00019511016
      %v1080 = vadd.f32 %v1079, 0.008332121
      %v1081 = vmul.f32 %v1078, %v1080
      %v1082 = vadd.f32 %v1081, -0.16666654
      %v1083 = vmul.f32 %v1078, %v1082
      %v1084 = vadd.f32 %v1083, 1.0
      %v1085 = vmul.f32 %v1084, %v1069
      %vm1086 = vweird.f32 %v473
      %v1087 = vadd.s32 %v1070, 3
      %v1088 = vand.u32 %v1087, 3
      %vm1089 = vcmp.lt.s32.totalorder %v1088, 2
      %vm1090 = vcmp.eq.s32.totalorder %v1088, 0
      %v1091 = vxor.u32 %v1085, 2147483648
      %v1092 = vsel %vm1090, %v1077, %v1091
      %vm1093 = vcmp.eq.s32.totalorder %v1088, 2
      %v1094 = vxor.u32 %v1077, 2147483648
      %v1095 = vsel %vm1093, %v1094, %v1085
      %v1096 = vsel %vm1089, %v1092, %v1095
      %v1097 = vsel %vm1086, nan, %v1096
      %v1098 = vand.u32 2147483647, %v474
      %vm1099 = vcmp.le.f32.partialorder %v1098, 0.7853982
      %vm1100 = vcmp.lt.s32.totalorder %v474, 0
      %v1101 = vand.u32 %v474, 2139095040
      %v1102 = vshrl.u32 %v1101, 23
      %v1103 = vsub.s32 %v1102, 127
      %v1104 = vand.u32 2147483647, %v474
      %v1105 = vand.u32 %v1104, 8388607
      %v1106 = vor.u32 %v1105, 8388608
      %v1107 = vsub.s32 0, %v1106
      %v1108 = vadd.s32 %v1103, 1
      %vm1109 = vcmp.gt.s32.totalorder %v1108, 0
      %v1110 = vsel %vm1109, %v1108, 0
      %v1111 = vshrl.u32 %v1110, 5
      %v1112 = vand.u32 %v1110, 31
      %v1113 = vsub.s32 32, %v1112
      %v1114 = vshrl.u32 683565275, %v1113
      %v1115 = vshll.u32 683565275, %v1112
      %v1116 = vshrl.u32 2475754826, %v1113
      %v1117 = vor.u32 %v1115, %v1116
      %v1118 = vshll.u32 2475754826, %v1112
      %v1119 = vshrl.u32 2131351028, %v1113
      %v1120 = vor.u32 %v1118, %v1119
      %v1121 = vshll.u32 2131351028, %v1112
      %v1122 = vshrl.u32 2102212464, %v1113
      %v1123 = vor.u32 %v1121, %v1122
      %v1124 = vshll.u32 2102212464, %v1112
      %v1125 = vshrl.u32 920167782, %v1113
      %v1126 = vor.u32 %v1124, %v1125
      %v1127 = vshll.u32 920167782, %v1112
      %v1128 = vshrl.u32 1326507024, %v1113
      %v1129 = vor.u32 %v1127, %v1128
      %vm1130 = vcmp.lt.s32.totalorder %v1111, 1
      %vm1131 = vcmp.lt.s32.totalorder %v1111, 2
      %vm1132 = vcmp.lt.s32.totalorder %v1111, 3
      %vm1133 = vcmp.lt.s32.totalorder %v1111, 4
      %v1134 = vsel %vm1130, %v1114, %v1117
      %v1135 = vsel %vm1133, %v1123, 2102212464
      %v1136 = vsel %vm1132, %v1120, %v1135
      %v1137 = vsel %vm1131, %v1134, %v1136
      %v1138 = vsel %vm1130, %v1117, %v1120
      %v1139 = vsel %vm1133, %v1126, 920167782
      %v1140 = vsel %vm1132, %v1123, %v1139
      %v1141 = vsel %vm1131, %v1138, %v1140
      %v1142 = vsel %vm1130, %v1120, %v1123
      %v1143 = vsel %vm1133, %v1129, 1326507024
      %v1144 = vsel %vm1132, %v1126, %v1143
      %v1145 = vsel %vm1131, %v1142, %v1144
      %v1146 = vshll.u32 %v1106, 8
      %v1147 = vand.u32 %v1146, 65535
      %v1148 = vshrl.u32 %v1146, 16
      %v1149 = vand.u32 %v1145, 65535
      %v1150 = vshrl.u32 %v1145, 16
      %v1151 = vmul.u32 %v1147, %v1149
      %v1152 = vmul.u32 %v1147, %v1150
      %v1153 = vmul.u32 %v1148, %v1149
      %v1154 = vmul.u32 %v1148, %v1150
      %v1155 = vshll.u32 %v1152, 16
      %v1156 = vshrl.u32 %v1152, 16
      %v1157 = vshll.u32 %v1153, 16
      %v1158 = vshrl.u32 %v1153, 16
      %vm1159 = vc.u32 %v1151, %v1155
      %v1160 = vsel %vm1159, 1, 0
      %v1161 = vadd.s32 %v1151, %v1155
      %v1162 = vadd.s32 %v1154, %v1160
      %vm1163 = vc.u32 %v1161, %v1157
      %v1164 = vsel %vm1163, 1, 0
      %v1165 = vadd.s32 %v1161, %v1157
      %v1166 = vadd.s32 %v1162, %v1164
      %v1167 = vadd.s32 %v1166, %v1156
      %v1168 = vadd.s32 %v1167, %v1158
      %v1169 = vand.u32 %v1146, 65535
      %v1170 = vshrl.u32 %v1146, 16
      %v1171 = vand.u32 %v1141, 65535
      %v1172 = vshrl.u32 %v1141, 16
      %v1173 = vmul.u32 %v1169, %v1171
      %v1174 = vmul.u32 %v1169, %v1172
      %v1175 = vmul.u32 %v1170, %v1171
      %v1176 = vmul.u32 %v1170, %v1172
      %v1177 = vshll.u32 %v1174, 16
      %v1178 = vshrl.u32 %v1174, 16
      %v1179 = vshll.u32 %v1175, 16
      %v1180 = vshrl.u32 %v1175, 16
      %vm1181 = vc.u32 %v1173, %v1177
      %v1182 = vsel %vm1181, 1, 0
      %v1183 = vadd.s32 %v1173, %v1177
      %v1184 = vadd.s32 %v1176, %v1182
      %vm1185 = vc.u32 %v1183, %v1179
      %v1186 = vsel %vm1185, 1, 0
      %v1187 = vadd.s32 %v1183, %v1179
      %v1188 = vadd.s32 %v1184, %v1186
      %v1189 = vadd.s32 %v1188, %v1178
      %v1190 = vadd.s32 %v1189, %v1180
      %v1191 = vmul.u32 %v1146, %v1137
      %v1192 = vadd.s32 %v1168, %v1187
      %vm1193 = vc.u32 %v1168, %v1187
      %v1194 = vadd.s32 %v1190, 1
      %v1195 = vsel %vm1193, %v1194, %v1190
      %v1196 = vadd.s32 %v1191, %v1195
      %v1197 = vadd.s32 %v1196, 536870912
      %v1198 = vshrl.u32 %v1197, 30
      %v1199 = vshll.u32 %v1198, 30
      %v1200 = vsub.s32 %v1196, %v1199
      %vm1201 = vcmp.lt.s32.totalorder %v1200, 0
      %v1202 = vsub.s32 0, %v1200
      %v1203 = vsel %vm1201, %v1202, %v1200
      %v1204 = vclz %v1203
      %v1205 = vsub.s32 %v1204, 2
      %vm1206 = vcmp.gt.s32.totalorder 0, %v1205
      %v1207 = vsel %vm1206, 0, %v1205
      %v1208 = vsub.s32 32, %v1207
      %v1209 = vshll.u32 %v1200, %v1207
      %v1210 = vshrl.u32 %v1192, %v1208
      %v1211 = vor.u32 %v1209, %v1210
      %v1212 = vsub.s32 4294967266, %v1207
      %v1213 = vadd.s32 %v1212, 127
      %v1214 = vshll.u32 %v1213, 23
      %v1215 = vor.u32 4788187, %v1214
      %v1216 = vand.u32 2147483647, %v1215
      %v1218 = vcvt.s32.f32 %v1211
      %v1219 = vmul.f32 %v1218, %v1216
      %v1220 = vxor.u32 %v1219, 2147483648
      %v1221 = vsel %vm1100, %v1220, %v1219
      %v1222 = vsub.s32 4, %v1198
      %v1223 = vsel %vm1100, %v1222, %v1198
      %v1224 = vsel %vm1099, %v474, %v1221
      %v1225 = vsel %vm1099, 0, %v1223
      %v1226 = vmul.f32 %v1224, %v1224
      %v1227 = vmul.f32 %v1226, -0.001358992
      %v1228 = vadd.f32 %v1227, 0.041655596
      %v1229 = vmul.f32 %v1226, %v1228
      %v1230 = vadd.f32 %v1229, -0.4999988
      %v1231 = vmul.f32 %v1226, %v1230
      %v1232 = vadd.f32 1.0, %v1231
      %v1233 = vmul.f32 %v1224, %v1224
      %v1234 = vmul.f32 %v1233, -0.00019511016
      %v1235 = vadd.f32 %v1234, 0.008332121
      %v1236 = vmul.f32 %v1233, %v1235
      %v1237 = vadd.f32 %v1236, -0.16666654
      %v1238 = vmul.f32 %v1233, %v1237
      %v1239 = vadd.f32 %v1238, 1.0
      %v1240 = vmul.f32 %v1239, %v1224
      %vm1241 = vweird.f32 %v474
      %v1242 = vadd.s32 %v1225, 3
      %v1243 = vand.u32 %v1242, 3
      %vm1244 = vcmp.lt.s32.totalorder %v1243, 2
      %vm1245 = vcmp.eq.s32.totalorder %v1243, 0
      %v1246 = vxor.u32 %v1240, 2147483648
      %v1247 = vsel %vm1245, %v1232, %v1246
      %vm1248 = vcmp.eq.s32.totalorder %v1243, 2
      %v1249 = vxor.u32 %v1232, 2147483648
      %v1250 = vsel %vm1248, %v1249, %v1240
      %v1251 = vsel %vm1244, %v1247, %v1250
      %v1252 = vsel %vm1241, nan, %v1251
      %v1253 = vand.u32 2147483647, %v475
      %vm1254 = vcmp.le.f32.partialorder %v1253, 0.7853982
      %vm1255 = vcmp.lt.s32.totalorder %v475, 0
      %v1256 = vand.u32 %v475, 2139095040
      %v1257 = vshrl.u32 %v1256, 23
      %v1258 = vsub.s32 %v1257, 127
      %v1259 = vand.u32 2147483647, %v475
      %v1260 = vand.u32 %v1259, 8388607
      %v1261 = vor.u32 %v1260, 8388608
      %v1262 = vsub.s32 0, %v1261
      %v1263 = vadd.s32 %v1258, 1
      %vm1264 = vcmp.gt.s32.totalorder %v1263, 0
      %v1265 = vsel %vm1264, %v1263, 0
      %v1266 = vshrl.u32 %v1265, 5
      %v1267 = vand.u32 %v1265, 31
      %v1268 = vsub.s32 32, %v1267
      %v1269 = vshrl.u32 683565275, %v1268
      %v1270 = vshll.u32 683565275, %v1267
      %v1271 = vshrl.u32 2475754826, %v1268
      %v1272 = vor.u32 %v1270, %v1271
      %v1273 = vshll.u32 2475754826, %v1267
      %v1274 = vshrl.u32 2131351028, %v1268
      %v1275 = vor.u32 %v1273, %v1274
      %v1276 = vshll.u32 2131351028, %v1267
      %v1277 = vshrl.u32 2102212464, %v1268
      %v1278 = vor.u32 %v1276, %v1277
      %v1279 = vshll.u32 2102212464, %v1267
      %v1280 = vshrl.u32 920167782, %v1268
      %v1281 = vor.u32 %v1279, %v1280
      %v1282 = vshll.u32 920167782, %v1267
      %v1283 = vshrl.u32 1326507024, %v1268
      %v1284 = vor.u32 %v1282, %v1283
      %vm1285 = vcmp.lt.s32.totalorder %v1266, 1
      %vm1286 = vcmp.lt.s32.totalorder %v1266, 2
      %vm1287 = vcmp.lt.s32.totalorder %v1266, 3
      %vm1288 = vcmp.lt.s32.totalorder %v1266, 4
      %v1289 = vsel %vm1285, %v1269, %v1272
      %v1290 = vsel %vm1288, %v1278, 2102212464
      %v1291 = vsel %vm1287, %v1275, %v1290
      %v1292 = vsel %vm1286, %v1289, %v1291
      %v1293 = vsel %vm1285, %v1272, %v1275
      %v1294 = vsel %vm1288, %v1281, 920167782
      %v1295 = vsel %vm1287, %v1278, %v1294
      %v1296 = vsel %vm1286, %v1293, %v1295
      %v1297 = vsel %vm1285, %v1275, %v1278
      %v1298 = vsel %vm1288, %v1284, 1326507024
      %v1299 = vsel %vm1287, %v1281, %v1298
      %v1300 = vsel %vm1286, %v1297, %v1299
      %v1301 = vshll.u32 %v1261, 8
      %v1302 = vand.u32 %v1301, 65535
      %v1303 = vshrl.u32 %v1301, 16
      %v1304 = vand.u32 %v1300, 65535
      %v1305 = vshrl.u32 %v1300, 16
      %v1306 = vmul.u32 %v1302, %v1304
      %v1307 = vmul.u32 %v1302, %v1305
      %v1308 = vmul.u32 %v1303, %v1304
      %v1309 = vmul.u32 %v1303, %v1305
      %v1310 = vshll.u32 %v1307, 16
      %v1311 = vshrl.u32 %v1307, 16
      %v1312 = vshll.u32 %v1308, 16
      %v1313 = vshrl.u32 %v1308, 16
      %vm1314 = vc.u32 %v1306, %v1310
      %v1315 = vsel %vm1314, 1, 0
      %v1316 = vadd.s32 %v1306, %v1310
      %v1317 = vadd.s32 %v1309, %v1315
      %vm1318 = vc.u32 %v1316, %v1312
      %v1319 = vsel %vm1318, 1, 0
      %v1320 = vadd.s32 %v1316, %v1312
      %v1321 = vadd.s32 %v1317, %v1319
      %v1322 = vadd.s32 %v1321, %v1311
      %v1323 = vadd.s32 %v1322, %v1313
      %v1324 = vand.u32 %v1301, 65535
      %v1325 = vshrl.u32 %v1301, 16
      %v1326 = vand.u32 %v1296, 65535
      %v1327 = vshrl.u32 %v1296, 16
      %v1328 = vmul.u32 %v1324, %v1326
      %v1329 = vmul.u32 %v1324, %v1327
      %v1330 = vmul.u32 %v1325, %v1326
      %v1331 = vmul.u32 %v1325, %v1327
      %v1332 = vshll.u32 %v1329, 16
      %v1333 = vshrl.u32 %v1329, 16
      %v1334 = vshll.u32 %v1330, 16
      %v1335 = vshrl.u32 %v1330, 16
      %vm1336 = vc.u32 %v1328, %v1332
      %v1337 = vsel %vm1336, 1, 0
      %v1338 = vadd.s32 %v1328, %v1332
      %v1339 = vadd.s32 %v1331, %v1337
      %vm1340 = vc.u32 %v1338, %v1334
      %v1341 = vsel %vm1340, 1, 0
      %v1342 = vadd.s32 %v1338, %v1334
      %v1343 = vadd.s32 %v1339, %v1341
      %v1344 = vadd.s32 %v1343, %v1333
      %v1345 = vadd.s32 %v1344, %v1335
      %v1346 = vmul.u32 %v1301, %v1292
      %v1347 = vadd.s32 %v1323, %v1342
      %vm1348 = vc.u32 %v1323, %v1342
      %v1349 = vadd.s32 %v1345, 1
      %v1350 = vsel %vm1348, %v1349, %v1345
      %v1351 = vadd.s32 %v1346, %v1350
      %v1352 = vadd.s32 %v1351, 536870912
      %v1353 = vshrl.u32 %v1352, 30
      %v1354 = vshll.u32 %v1353, 30
      %v1355 = vsub.s32 %v1351, %v1354
      %vm1356 = vcmp.lt.s32.totalorder %v1355, 0
      %v1357 = vsub.s32 0, %v1355
      %v1358 = vsel %vm1356, %v1357, %v1355
      %v1359 = vclz %v1358
      %v1360 = vsub.s32 %v1359, 2
      %vm1361 = vcmp.gt.s32.totalorder 0, %v1360
      %v1362 = vsel %vm1361, 0, %v1360
      %v1363 = vsub.s32 32, %v1362
      %v1364 = vshll.u32 %v1355, %v1362
      %v1365 = vshrl.u32 %v1347, %v1363
      %v1366 = vor.u32 %v1364, %v1365
      %v1367 = vsub.s32 4294967266, %v1362
      %v1368 = vadd.s32 %v1367, 127
      %v1369 = vshll.u32 %v1368, 23
      %v1370 = vor.u32 4788187, %v1369
      %v1371 = vand.u32 2147483647, %v1370
      %v1373 = vcvt.s32.f32 %v1366
      %v1374 = vmul.f32 %v1373, %v1371
      %v1375 = vxor.u32 %v1374, 2147483648
      %v1376 = vsel %vm1255, %v1375, %v1374
      %v1377 = vsub.s32 4, %v1353
      %v1378 = vsel %vm1255, %v1377, %v1353
      %v1379 = vsel %vm1254, %v475, %v1376
      %v1380 = vsel %vm1254, 0, %v1378
      %v1381 = vmul.f32 %v1379, %v1379
      %v1382 = vmul.f32 %v1381, -0.001358992
      %v1383 = vadd.f32 %v1382, 0.041655596
      %v1384 = vmul.f32 %v1381, %v1383
      %v1385 = vadd.f32 %v1384, -0.4999988
      %v1386 = vmul.f32 %v1381, %v1385
      %v1387 = vadd.f32 1.0, %v1386
      %v1388 = vmul.f32 %v1379, %v1379
      %v1389 = vmul.f32 %v1388, -0.00019511016
      %v1390 = vadd.f32 %v1389, 0.008332121
      %v1391 = vmul.f32 %v1388, %v1390
      %v1392 = vadd.f32 %v1391, -0.16666654
      %v1393 = vmul.f32 %v1388, %v1392
      %v1394 = vadd.f32 %v1393, 1.0
      %v1395 = vmul.f32 %v1394, %v1379
      %vm1396 = vweird.f32 %v475
      %v1397 = vadd.s32 %v1380, 3
      %v1398 = vand.u32 %v1397, 3
      %vm1399 = vcmp.lt.s32.totalorder %v1398, 2
      %vm1400 = vcmp.eq.s32.totalorder %v1398, 0
      %v1401 = vxor.u32 %v1395, 2147483648
      %v1402 = vsel %vm1400, %v1387, %v1401
      %vm1403 = vcmp.eq.s32.totalorder %v1398, 2
      %v1404 = vxor.u32 %v1387, 2147483648
      %v1405 = vsel %vm1403, %v1404, %v1395
      %v1406 = vsel %vm1399, %v1402, %v1405
      %v1407 = vsel %vm1396, nan, %v1406
      %v1408 = vand.u32 2147483647, %v476
      %vm1409 = vcmp.le.f32.partialorder %v1408, 0.7853982
      %vm1410 = vcmp.lt.s32.totalorder %v476, 0
      %v1411 = vand.u32 %v476, 2139095040
      %v1412 = vshrl.u32 %v1411, 23
      %v1413 = vsub.s32 %v1412, 127
      %v1414 = vand.u32 2147483647, %v476
      %v1415 = vand.u32 %v1414, 8388607
      %v1416 = vor.u32 %v1415, 8388608
      %v1417 = vsub.s32 0, %v1416
      %v1418 = vadd.s32 %v1413, 1
      %vm1419 = vcmp.gt.s32.totalorder %v1418, 0
      %v1420 = vsel %vm1419, %v1418, 0
      %v1421 = vshrl.u32 %v1420, 5
      %v1422 = vand.u32 %v1420, 31
      %v1423 = vsub.s32 32, %v1422
      %v1424 = vshrl.u32 683565275, %v1423
      %v1425 = vshll.u32 683565275, %v1422
      %v1426 = vshrl.u32 2475754826, %v1423
      %v1427 = vor.u32 %v1425, %v1426
      %v1428 = vshll.u32 2475754826, %v1422
      %v1429 = vshrl.u32 2131351028, %v1423
      %v1430 = vor.u32 %v1428, %v1429
      %v1431 = vshll.u32 2131351028, %v1422
      %v1432 = vshrl.u32 2102212464, %v1423
      %v1433 = vor.u32 %v1431, %v1432
      %v1434 = vshll.u32 2102212464, %v1422
      %v1435 = vshrl.u32 920167782, %v1423
      %v1436 = vor.u32 %v1434, %v1435
      %v1437 = vshll.u32 920167782, %v1422
      %v1438 = vshrl.u32 1326507024, %v1423
      %v1439 = vor.u32 %v1437, %v1438
      %vm1440 = vcmp.lt.s32.totalorder %v1421, 1
      %vm1441 = vcmp.lt.s32.totalorder %v1421, 2
      %vm1442 = vcmp.lt.s32.totalorder %v1421, 3
      %vm1443 = vcmp.lt.s32.totalorder %v1421, 4
      %v1444 = vsel %vm1440, %v1424, %v1427
      %v1445 = vsel %vm1443, %v1433, 2102212464
      %v1446 = vsel %vm1442, %v1430, %v1445
      %v1447 = vsel %vm1441, %v1444, %v1446
      %v1448 = vsel %vm1440, %v1427, %v1430
      %v1449 = vsel %vm1443, %v1436, 920167782
      %v1450 = vsel %vm1442, %v1433, %v1449
      %v1451 = vsel %vm1441, %v1448, %v1450
      %v1452 = vsel %vm1440, %v1430, %v1433
      %v1453 = vsel %vm1443, %v1439, 1326507024
      %v1454 = vsel %vm1442, %v1436, %v1453
      %v1455 = vsel %vm1441, %v1452, %v1454
      %v1456 = vshll.u32 %v1416, 8
      %v1457 = vand.u32 %v1456, 65535
      %v1458 = vshrl.u32 %v1456, 16
      %v1459 = vand.u32 %v1455, 65535
      %v1460 = vshrl.u32 %v1455, 16
      %v1461 = vmul.u32 %v1457, %v1459
      %v1462 = vmul.u32 %v1457, %v1460
      %v1463 = vmul.u32 %v1458, %v1459
      %v1464 = vmul.u32 %v1458, %v1460
      %v1465 = vshll.u32 %v1462, 16
      %v1466 = vshrl.u32 %v1462, 16
      %v1467 = vshll.u32 %v1463, 16
      %v1468 = vshrl.u32 %v1463, 16
      %vm1469 = vc.u32 %v1461, %v1465
      %v1470 = vsel %vm1469, 1, 0
      %v1471 = vadd.s32 %v1461, %v1465
      %v1472 = vadd.s32 %v1464, %v1470
      %vm1473 = vc.u32 %v1471, %v1467
      %v1474 = vsel %vm1473, 1, 0
      %v1475 = vadd.s32 %v1471, %v1467
      %v1476 = vadd.s32 %v1472, %v1474
      %v1477 = vadd.s32 %v1476, %v1466
      %v1478 = vadd.s32 %v1477, %v1468
      %v1479 = vand.u32 %v1456, 65535
      %v1480 = vshrl.u32 %v1456, 16
      %v1481 = vand.u32 %v1451, 65535
      %v1482 = vshrl.u32 %v1451, 16
      %v1483 = vmul.u32 %v1479, %v1481
      %v1484 = vmul.u32 %v1479, %v1482
      %v1485 = vmul.u32 %v1480, %v1481
      %v1486 = vmul.u32 %v1480, %v1482
      %v1487 = vshll.u32 %v1484, 16
      %v1488 = vshrl.u32 %v1484, 16
      %v1489 = vshll.u32 %v1485, 16
      %v1490 = vshrl.u32 %v1485, 16
      %vm1491 = vc.u32 %v1483, %v1487
      %v1492 = vsel %vm1491, 1, 0
      %v1493 = vadd.s32 %v1483, %v1487
      %v1494 = vadd.s32 %v1486, %v1492
      %vm1495 = vc.u32 %v1493, %v1489
      %v1496 = vsel %vm1495, 1, 0
      %v1497 = vadd.s32 %v1493, %v1489
      %v1498 = vadd.s32 %v1494, %v1496
      %v1499 = vadd.s32 %v1498, %v1488
      %v1500 = vadd.s32 %v1499, %v1490
      %v1501 = vmul.u32 %v1456, %v1447
      %v1502 = vadd.s32 %v1478, %v1497
      %vm1503 = vc.u32 %v1478, %v1497
      %v1504 = vadd.s32 %v1500, 1
      %v1505 = vsel %vm1503, %v1504, %v1500
      %v1506 = vadd.s32 %v1501, %v1505
      %v1507 = vadd.s32 %v1506, 536870912
      %v1508 = vshrl.u32 %v1507, 30
      %v1509 = vshll.u32 %v1508, 30
      %v1510 = vsub.s32 %v1506, %v1509
      %vm1511 = vcmp.lt.s32.totalorder %v1510, 0
      %v1512 = vsub.s32 0, %v1510
      %v1513 = vsel %vm1511, %v1512, %v1510
      %v1514 = vclz %v1513
      %v1515 = vsub.s32 %v1514, 2
      %vm1516 = vcmp.gt.s32.totalorder 0, %v1515
      %v1517 = vsel %vm1516, 0, %v1515
      %v1518 = vsub.s32 32, %v1517
      %v1519 = vshll.u32 %v1510, %v1517
      %v1520 = vshrl.u32 %v1502, %v1518
      %v1521 = vor.u32 %v1519, %v1520
      %v1522 = vsub.s32 4294967266, %v1517
      %v1523 = vadd.s32 %v1522, 127
      %v1524 = vshll.u32 %v1523, 23
      %v1525 = vor.u32 4788187, %v1524
      %v1526 = vand.u32 2147483647, %v1525
      %v1528 = vcvt.s32.f32 %v1521
      %v1529 = vmul.f32 %v1528, %v1526
      %v1530 = vxor.u32 %v1529, 2147483648
      %v1531 = vsel %vm1410, %v1530, %v1529
      %v1532 = vsub.s32 4, %v1508
      %v1533 = vsel %vm1410, %v1532, %v1508
      %v1534 = vsel %vm1409, %v476, %v1531
      %v1535 = vsel %vm1409, 0, %v1533
      %v1536 = vmul.f32 %v1534, %v1534
      %v1537 = vmul.f32 %v1536, -0.001358992
      %v1538 = vadd.f32 %v1537, 0.041655596
      %v1539 = vmul.f32 %v1536, %v1538
      %v1540 = vadd.f32 %v1539, -0.4999988
      %v1541 = vmul.f32 %v1536, %v1540
      %v1542 = vadd.f32 1.0, %v1541
      %v1543 = vmul.f32 %v1534, %v1534
      %v1544 = vmul.f32 %v1543, -0.00019511016
      %v1545 = vadd.f32 %v1544, 0.008332121
      %v1546 = vmul.f32 %v1543, %v1545
      %v1547 = vadd.f32 %v1546, -0.16666654
      %v1548 = vmul.f32 %v1543, %v1547
      %v1549 = vadd.f32 %v1548, 1.0
      %v1550 = vmul.f32 %v1549, %v1534
      %vm1551 = vweird.f32 %v476
      %v1552 = vadd.s32 %v1535, 3
      %v1553 = vand.u32 %v1552, 3
      %vm1554 = vcmp.lt.s32.totalorder %v1553, 2
      %vm1555 = vcmp.eq.s32.totalorder %v1553, 0
      %v1556 = vxor.u32 %v1550, 2147483648
      %v1557 = vsel %vm1555, %v1542, %v1556
      %vm1558 = vcmp.eq.s32.totalorder %v1553, 2
      %v1559 = vxor.u32 %v1542, 2147483648
      %v1560 = vsel %vm1558, %v1559, %v1550
      %v1561 = vsel %vm1554, %v1557, %v1560
      %v1562 = vsel %vm1551, nan, %v1561
      %v1563 = vand.u32 2147483647, %v477
      %vm1564 = vcmp.le.f32.partialorder %v1563, 0.7853982
      %vm1565 = vcmp.lt.s32.totalorder %v477, 0
      %v1566 = vand.u32 %v477, 2139095040
      %v1567 = vshrl.u32 %v1566, 23
      %v1568 = vsub.s32 %v1567, 127
      %v1569 = vand.u32 2147483647, %v477
      %v1570 = vand.u32 %v1569, 8388607
      %v1571 = vor.u32 %v1570, 8388608
      %v1572 = vsub.s32 0, %v1571
      %v1573 = vadd.s32 %v1568, 1
      %vm1574 = vcmp.gt.s32.totalorder %v1573, 0
      %v1575 = vsel %vm1574, %v1573, 0
      %v1576 = vshrl.u32 %v1575, 5
      %v1577 = vand.u32 %v1575, 31
      %v1578 = vsub.s32 32, %v1577
      %v1579 = vshrl.u32 683565275, %v1578
      %v1580 = vshll.u32 683565275, %v1577
      %v1581 = vshrl.u32 2475754826, %v1578
      %v1582 = vor.u32 %v1580, %v1581
      %v1583 = vshll.u32 2475754826, %v1577
      %v1584 = vshrl.u32 2131351028, %v1578
      %v1585 = vor.u32 %v1583, %v1584
      %v1586 = vshll.u32 2131351028, %v1577
      %v1587 = vshrl.u32 2102212464, %v1578
      %v1588 = vor.u32 %v1586, %v1587
      %v1589 = vshll.u32 2102212464, %v1577
      %v1590 = vshrl.u32 920167782, %v1578
      %v1591 = vor.u32 %v1589, %v1590
      %v1592 = vshll.u32 920167782, %v1577
      %v1593 = vshrl.u32 1326507024, %v1578
      %v1594 = vor.u32 %v1592, %v1593
      %vm1595 = vcmp.lt.s32.totalorder %v1576, 1
      %vm1596 = vcmp.lt.s32.totalorder %v1576, 2
      %vm1597 = vcmp.lt.s32.totalorder %v1576, 3
      %vm1598 = vcmp.lt.s32.totalorder %v1576, 4
      %v1599 = vsel %vm1595, %v1579, %v1582
      %v1600 = vsel %vm1598, %v1588, 2102212464
      %v1601 = vsel %vm1597, %v1585, %v1600
      %v1602 = vsel %vm1596, %v1599, %v1601
      %v1603 = vsel %vm1595, %v1582, %v1585
      %v1604 = vsel %vm1598, %v1591, 920167782
      %v1605 = vsel %vm1597, %v1588, %v1604
      %v1606 = vsel %vm1596, %v1603, %v1605
      %v1607 = vsel %vm1595, %v1585, %v1588
      %v1608 = vsel %vm1598, %v1594, 1326507024
      %v1609 = vsel %vm1597, %v1591, %v1608
      %v1610 = vsel %vm1596, %v1607, %v1609
      %v1611 = vshll.u32 %v1571, 8
      %v1612 = vand.u32 %v1611, 65535
      %v1613 = vshrl.u32 %v1611, 16
      %v1614 = vand.u32 %v1610, 65535
      %v1615 = vshrl.u32 %v1610, 16
      %v1616 = vmul.u32 %v1612, %v1614
      %v1617 = vmul.u32 %v1612, %v1615
      %v1618 = vmul.u32 %v1613, %v1614
      %v1619 = vmul.u32 %v1613, %v1615
      %v1620 = vshll.u32 %v1617, 16
      %v1621 = vshrl.u32 %v1617, 16
      %v1622 = vshll.u32 %v1618, 16
      %v1623 = vshrl.u32 %v1618, 16
      %vm1624 = vc.u32 %v1616, %v1620
      %v1625 = vsel %vm1624, 1, 0
      %v1626 = vadd.s32 %v1616, %v1620
      %v1627 = vadd.s32 %v1619, %v1625
      %vm1628 = vc.u32 %v1626, %v1622
      %v1629 = vsel %vm1628, 1, 0
      %v1630 = vadd.s32 %v1626, %v1622
      %v1631 = vadd.s32 %v1627, %v1629
      %v1632 = vadd.s32 %v1631, %v1621
      %v1633 = vadd.s32 %v1632, %v1623
      %v1634 = vand.u32 %v1611, 65535
      %v1635 = vshrl.u32 %v1611, 16
      %v1636 = vand.u32 %v1606, 65535
      %v1637 = vshrl.u32 %v1606, 16
      %v1638 = vmul.u32 %v1634, %v1636
      %v1639 = vmul.u32 %v1634, %v1637
      %v1640 = vmul.u32 %v1635, %v1636
      %v1641 = vmul.u32 %v1635, %v1637
      %v1642 = vshll.u32 %v1639, 16
      %v1643 = vshrl.u32 %v1639, 16
      %v1644 = vshll.u32 %v1640, 16
      %v1645 = vshrl.u32 %v1640, 16
      %vm1646 = vc.u32 %v1638, %v1642
      %v1647 = vsel %vm1646, 1, 0
      %v1648 = vadd.s32 %v1638, %v1642
      %v1649 = vadd.s32 %v1641, %v1647
      %vm1650 = vc.u32 %v1648, %v1644
      %v1651 = vsel %vm1650, 1, 0
      %v1652 = vadd.s32 %v1648, %v1644
      %v1653 = vadd.s32 %v1649, %v1651
      %v1654 = vadd.s32 %v1653, %v1643
      %v1655 = vadd.s32 %v1654, %v1645
      %v1656 = vmul.u32 %v1611, %v1602
      %v1657 = vadd.s32 %v1633, %v1652
      %vm1658 = vc.u32 %v1633, %v1652
      %v1659 = vadd.s32 %v1655, 1
      %v1660 = vsel %vm1658, %v1659, %v1655
      %v1661 = vadd.s32 %v1656, %v1660
      %v1662 = vadd.s32 %v1661, 536870912
      %v1663 = vshrl.u32 %v1662, 30
      %v1664 = vshll.u32 %v1663, 30
      %v1665 = vsub.s32 %v1661, %v1664
      %vm1666 = vcmp.lt.s32.totalorder %v1665, 0
      %v1667 = vsub.s32 0, %v1665
      %v1668 = vsel %vm1666, %v1667, %v1665
      %v1669 = vclz %v1668
      %v1670 = vsub.s32 %v1669, 2
      %vm1671 = vcmp.gt.s32.totalorder 0, %v1670
      %v1672 = vsel %vm1671, 0, %v1670
      %v1673 = vsub.s32 32, %v1672
      %v1674 = vshll.u32 %v1665, %v1672
      %v1675 = vshrl.u32 %v1657, %v1673
      %v1676 = vor.u32 %v1674, %v1675
      %v1677 = vsub.s32 4294967266, %v1672
      %v1678 = vadd.s32 %v1677, 127
      %v1679 = vshll.u32 %v1678, 23
      %v1680 = vor.u32 4788187, %v1679
      %v1681 = vand.u32 2147483647, %v1680
      %v1683 = vcvt.s32.f32 %v1676
      %v1684 = vmul.f32 %v1683, %v1681
      %v1685 = vxor.u32 %v1684, 2147483648
      %v1686 = vsel %vm1565, %v1685, %v1684
      %v1687 = vsub.s32 4, %v1663
      %v1688 = vsel %vm1565, %v1687, %v1663
      %v1689 = vsel %vm1564, %v477, %v1686
      %v1690 = vsel %vm1564, 0, %v1688
      %v1691 = vmul.f32 %v1689, %v1689
      %v1692 = vmul.f32 %v1691, -0.001358992
      %v1693 = vadd.f32 %v1692, 0.041655596
      %v1694 = vmul.f32 %v1691, %v1693
      %v1695 = vadd.f32 %v1694, -0.4999988
      %v1696 = vmul.f32 %v1691, %v1695
      %v1697 = vadd.f32 1.0, %v1696
      %v1698 = vmul.f32 %v1689, %v1689
      %v1699 = vmul.f32 %v1698, -0.00019511016
      %v1700 = vadd.f32 %v1699, 0.008332121
      %v1701 = vmul.f32 %v1698, %v1700
      %v1702 = vadd.f32 %v1701, -0.16666654
      %v1703 = vmul.f32 %v1698, %v1702
      %v1704 = vadd.f32 %v1703, 1.0
      %v1705 = vmul.f32 %v1704, %v1689
      %vm1706 = vweird.f32 %v477
      %v1707 = vadd.s32 %v1690, 3
      %v1708 = vand.u32 %v1707, 3
      %vm1709 = vcmp.lt.s32.totalorder %v1708, 2
      %vm1710 = vcmp.eq.s32.totalorder %v1708, 0
      %v1711 = vxor.u32 %v1705, 2147483648
      %v1712 = vsel %vm1710, %v1697, %v1711
      %vm1713 = vcmp.eq.s32.totalorder %v1708, 2
      %v1714 = vxor.u32 %v1697, 2147483648
      %v1715 = vsel %vm1713, %v1714, %v1705
      %v1716 = vsel %vm1709, %v1712, %v1715
      %v1717 = vsel %vm1706, nan, %v1716
      %v1718 = vpack.c.bf16 %v311, %v310
      %v1719 = vpack.c.bf16 %v313, %v312
      %v1720 = vpack.c.bf16 %v315, %v314
      %v1721 = vpack.c.bf16 %v317, %v316
      %v1722 = vld [vmem:[%s3] sm:$0xf]
      %v1723 = vld [vmem:[%s3 + $0x4] sm:$0xf]
      %v1724 = vld [vmem:[%s3 + $0x8] sm:$0xf]
      %v1725 = vld [vmem:[%s3 + $0xc] sm:$0xf]
      %v1726 = vld [vmem:[%s3 + $0x10] sm:$0x3]
      %v1727 = vpack.c.bf16 %v787, %v632
      %v1728 = vpack.c.bf16 %v1097, %v942
      %v1729 = vpack.c.bf16 %v1407, %v1252
      %v1730 = vpack.c.bf16 %v1717, %v1562
      %v1731 = vld [vmem:[%s4] sm:$0xf]
      %v1732 = vld [vmem:[%s4 + $0x4] sm:$0xf]
      %v1733 = vld [vmem:[%s4 + $0x8] sm:$0xf]
      %v1734 = vld [vmem:[%s4 + $0xc] sm:$0xf]
      %v1735 = vld [vmem:[%s4 + $0x10] sm:$0x3]
      %v1741 = vunpack.c.l.b16 %v1731
      %v1742 = vunpack.c.l.b16 %v1732
      %v1743 = vunpack.c.l.b16 %v1733
      %v1744 = vunpack.c.l.b16 %v1734
      %v1745 = vunpack.c.l.b16 %v1735
      %v1746 = vpack.c.b16 %v1742, %v1741
      %v1747 = vpack.c.b16 %v1744, %v1743
      %v1748 = vpack.c.b16 %v1745, %v1745
      %vm1751 = vcmask 293888
      %v1753 = vsel %vm1751, %v1727, 0
      %v1756 = vsel %vm1751, %v1728, 0
      %v1759 = vsel %vm1751, %v1729, 0
      %v1762 = vsel %vm1751, %v1730, 0
      %vm1764 = vcmask 1041408
      %v1766 = vsel %vm1764, %v1748, 0
      %1768 = vmatpush.bf16.msra.mxu0 0
      %1769 = vmatpush.bf16.msra.mxu0 0
      %1770 = vmatpush.bf16.msra.mxu0 0
      %1771 = vmatpush.bf16.msra.mxu0 0
      %1772 = vmatpush.bf16.msra.mxu0 0
      %1773 = vmatpush.bf16.msra.mxu0 %v1766
      %1774 = vmatpush.bf16.msra.mxu0 %v1747
      %1775 = vmatpush.bf16.msra.mxu0 %v1746
      %1776 = vmatmul.bf16.gmra.mxu0 %v1753
      %v1777 = vpop.f32.mrf.mxu0
      %v1778 = vadd.f32 0.0, %v1777
      %v1779 = vpop.f32.mrf.mxu0
      %v1780 = vadd.f32 0.0, %v1779
      %1781 = vmatmul.bf16.gmra.mxu0 %v1756
      %v1782 = vpop.f32.mrf.mxu0
      %v1783 = vadd.f32 0.0, %v1782
      %v1784 = vpop.f32.mrf.mxu0
      %v1785 = vadd.f32 0.0, %v1784
      %1786 = vmatmul.bf16.gmra.mxu0 %v1759
      %v1787 = vpop.f32.mrf.mxu0
      %v1788 = vadd.f32 0.0, %v1787
      %v1789 = vpop.f32.mrf.mxu0
      %v1790 = vadd.f32 0.0, %v1789
      %1791 = vmatmul.bf16.gmra.mxu0 %v1762
      %v1792 = vpop.f32.mrf.mxu0
      %v1793 = vadd.f32 0.0, %v1792
      %v1794 = vpop.f32.mrf.mxu0
      %v1795 = vadd.f32 0.0, %v1794
      %1796 = vdwg.mxu0
      %v1802 = vunpack.c.l.b16 %v1722
      %v1803 = vunpack.c.l.b16 %v1723
      %v1804 = vunpack.c.l.b16 %v1724
      %v1805 = vunpack.c.l.b16 %v1725
      %v1806 = vunpack.c.l.b16 %v1726
      %v1807 = vpack.c.b16 %v1803, %v1802
      %v1808 = vpack.c.b16 %v1805, %v1804
      %v1809 = vpack.c.b16 %v1806, %v1806
      %vm1812 = vcmask 285696
      %v1814 = vsel %vm1812, %v1718, 0
      %v1817 = vsel %vm1812, %v1719, 0
      %v1820 = vsel %vm1812, %v1720, 0
      %v1823 = vsel %vm1812, %v1721, 0
      %vm1825 = vcmask 1040384
      %v1826 = vsel %vm1825, 4294967295, 65535
      %v1827 = vsel %vm1764, %v1826, 0
      %v1829 = vand.u32 %v1809, %v1827
      %1831 = vmatpush.bf16.msra.mxu0 0
      %1832 = vmatpush.bf16.msra.mxu0 0
      %1833 = vmatpush.bf16.msra.mxu0 0
      %1834 = vmatpush.bf16.msra.mxu0 0
      %1835 = vmatpush.bf16.msra.mxu0 0
      %1836 = vmatpush.bf16.msra.mxu0 %v1829
      %1837 = vmatpush.bf16.msra.mxu0 %v1808
      %1838 = vmatpush.bf16.msra.mxu0 %v1807
      %1839 = vmatmul.bf16.gmra.mxu0 %v1814
      %v1840 = vpop.f32.mrf.mxu0
      %v1841 = vadd.f32 %v1778, %v1840
      %v1842 = vpop.f32.mrf.mxu0
      %v1843 = vadd.f32 %v1780, %v1842
      %1844 = vmatmul.bf16.gmra.mxu0 %v1817
      %v1845 = vpop.f32.mrf.mxu0
      %v1846 = vadd.f32 %v1783, %v1845
      %v1847 = vpop.f32.mrf.mxu0
      %v1848 = vadd.f32 %v1785, %v1847
      %1849 = vmatmul.bf16.gmra.mxu0 %v1820
      %v1850 = vpop.f32.mrf.mxu0
      %v1851 = vadd.f32 %v1788, %v1850
      %v1852 = vpop.f32.mrf.mxu0
      %v1853 = vadd.f32 %v1790, %v1852
      %1854 = vmatmul.bf16.gmra.mxu0 %v1823
      %v1855 = vpop.f32.mrf.mxu0
      %v1856 = vadd.f32 %v1793, %v1855
      %v1857 = vpop.f32.mrf.mxu0
      %v1858 = vadd.f32 %v1795, %v1857
      %1859 = vdwg.mxu0
      %v1860 = vld [vmem:[%s5] sm:$0x1]
      %v1862 = vperm.slane %v1860, 0
      %v1864 = vadd.f32 %v1841, %v1862
      %v1865 = vadd.f32 %v1843, %v1862
      %v1866 = vadd.f32 %v1846, %v1862
      %v1867 = vadd.f32 %v1848, %v1862
      %v1868 = vadd.f32 %v1851, %v1862
      %v1869 = vadd.f32 %v1853, %v1862
      %v1870 = vadd.f32 %v1856, %v1862
      %v1871 = vadd.f32 %v1858, %v1862
      %v1872 = vmax.f32 %v1864, 0.0
      %v1873 = vmax.f32 %v1865, 0.0
      %v1874 = vmax.f32 %v1866, 0.0
      %v1875 = vmax.f32 %v1867, 0.0
      %v1876 = vmax.f32 %v1868, 0.0
      %v1877 = vmax.f32 %v1869, 0.0
      %v1878 = vmax.f32 %v1870, 0.0
      %v1879 = vmax.f32 %v1871, 0.0
      %v1880 = vpack.c.bf16 %v1873, %v1872
      %v1881 = vpack.c.bf16 %v1875, %v1874
      %v1882 = vpack.c.bf16 %v1877, %v1876
      %v1883 = vpack.c.bf16 %v1879, %v1878
      %v1884 = vld [vmem:[%s6] sm:$0xf]
      %v1885 = vld [vmem:[%s6 + $0x4] sm:$0xf]
      %v1886 = vld [vmem:[%s6 + $0x8] sm:$0xf]
      %v1887 = vld [vmem:[%s6 + $0xc] sm:$0xf]
      %v1888 = vld [vmem:[%s6 + $0x10] sm:$0xf]
      %v1889 = vld [vmem:[%s6 + $0x14] sm:$0xf]
      %v1890 = vld [vmem:[%s6 + $0x18] sm:$0xf]
      %v1891 = vld [vmem:[%s6 + $0x1c] sm:$0xf]
      %v1892 = vld [vmem:[%s7] sm:$0x1]
      %v1894 = vperm.slane %v1892, 0
      %v1904 = vunpack.c.l.b16 %v1884
      %v1905 = vunpack.c.l.b16 %v1885
      %v1906 = vunpack.c.l.b16 %v1886
      %v1907 = vunpack.c.l.b16 %v1887
      %v1908 = vunpack.c.l.b16 %v1888
      %v1909 = vunpack.c.l.b16 %v1889
      %v1910 = vunpack.c.l.b16 %v1890
      %v1911 = vunpack.c.l.b16 %v1891
      %v1912 = vpack.c.b16 %v1905, %v1904
      %v1913 = vpack.c.b16 %v1907, %v1906
      %v1914 = vpack.c.b16 %v1909, %v1908
      %v1915 = vpack.c.b16 %v1911, %v1910
      %vm1920 = vcmask 523264
      %v1922 = vsel %vm1920, %v1880, 0
      %v1925 = vsel %vm1920, %v1881, 0
      %v1928 = vsel %vm1920, %v1882, 0
      %v1931 = vsel %vm1920, %v1883, 0
      %1933 = vmatpush.bf16.msra.mxu0 0
      %1934 = vmatpush.bf16.msra.mxu0 0
      %1935 = vmatpush.bf16.msra.mxu0 0
      %1936 = vmatpush.bf16.msra.mxu0 0
      %1937 = vmatpush.bf16.msra.mxu0 %v1915
      %1938 = vmatpush.bf16.msra.mxu0 %v1914
      %1939 = vmatpush.bf16.msra.mxu0 %v1913
      %1940 = vmatpush.bf16.msra.mxu0 %v1912
      %1941 = vmatmul.bf16.gmra.mxu0 %v1922
      %v1942 = vpop.f32.mrf.mxu0
      %v1943 = vadd.f32 %v1894, %v1942
      %v1944 = vpop.f32.mrf.mxu0
      %v1945 = vadd.f32 %v1894, %v1944
      %1946 = vmatmul.bf16.gmra.mxu0 %v1925
      %v1947 = vpop.f32.mrf.mxu0
      %v1948 = vadd.f32 %v1894, %v1947
      %v1949 = vpop.f32.mrf.mxu0
      %v1950 = vadd.f32 %v1894, %v1949
      %1951 = vmatmul.bf16.gmra.mxu0 %v1928
      %v1952 = vpop.f32.mrf.mxu0
      %v1953 = vadd.f32 %v1894, %v1952
      %v1954 = vpop.f32.mrf.mxu0
      %v1955 = vadd.f32 %v1894, %v1954
      %1956 = vmatmul.bf16.gmra.mxu0 %v1931
      %v1957 = vpop.f32.mrf.mxu0
      %v1958 = vadd.f32 %v1894, %v1957
      %v1959 = vpop.f32.mrf.mxu0
      %v1960 = vadd.f32 %v1894, %v1959
      %1961 = vdwg.mxu0
      %v1962 = vtanh.pop %v1943
      %v1963 = vtanh.pop %v1945
      %v1964 = vtanh.pop %v1948
      %v1965 = vtanh.pop %v1950
      %v1966 = vtanh.pop %v1953
      %v1967 = vtanh.pop %v1955
      %v1968 = vtanh.pop %v1958
      %v1969 = vtanh.pop %v1960
      %vm1970 = vcmask 23552
      %1971 = vst.msk [vmem:[%s307] sm:$0xff] %vm1970, %v1962
      %1972 = vst.msk [vmem:[%s307 + $0x8] sm:$0xff] %vm1970, %v1963
      %1973 = vst.msk [vmem:[%s307 + $0x10] sm:$0xff] %vm1970, %v1964
      %1974 = vst.msk [vmem:[%s307 + $0x18] sm:$0xff] %vm1970, %v1965
      %1975 = vst.msk [vmem:[%s307 + $0x20] sm:$0xff] %vm1970, %v1966
      %1976 = vst.msk [vmem:[%s307 + $0x28] sm:$0xff] %vm1970, %v1967
      %1977 = vst.msk [vmem:[%s307 + $0x30] sm:$0xff] %vm1970, %v1968
      %1978 = vst.msk [vmem:[%s307 + $0x38] sm:$0xff] %vm1970, %v1969
      %s1979 = smul.u32 8, %s19
      %p1980 = scmp.lt.s32.totalorder %s1979, 31
      %s1981 = scalar_select %p1980, %s1979, 31
      %s1982 = smul.addr %s1981, 8
      %s1983 = scalar_lea.vmem %s8, %s1982
      // Predicated region
      $region53: #{norlearner_forward.1} parent=51 // pred_check
        %p1984 = pneg %p210
      $region54: #{norlearner_forward.1} parent=51 // pred_check_branch
        %1986 = sbr.rel (%p1984) target = $region56
      $region55: #{norlearner_forward.1} parent=51 // pred_region
        %s1987 = smul.u32 8, %s19
      $region56: #{norlearner_forward.1} parent=51 // pred_fallthru
        _
    $region52: #{norlearner_forward.1} parent=5 // pred_fallthru
      _
    %p1988 = scmp.le.s32.totalorder 2, %s14
    // Predicated region
    $region57: #{norlearner_forward.1} parent=5 // pred_check
      %p1989 = pneg %p1988
    $region58: #{norlearner_forward.1} parent=5 // pred_check_branch
      %1991 = sbr.rel (%p1989) target = $region60
    $region59: #{norlearner_forward.1} parent=5 // pred_region
      %s1992 = ssub.s32 %s14, 2
      // Predicated region
      $region61: #{norlearner_forward.1} parent=59 // pred_check
        %p1993 = pneg %p216
      $region62: #{norlearner_forward.1} parent=59 // pred_check_branch
        %1995 = sbr.rel (%p1993) target = $region64
      $region63: #{norlearner_forward.1} parent=59 // pred_region
        %s1996 = smul.u32 8, %s20
        %p1997 = scmp.lt.s32.totalorder %s1996, 31
        %s1998 = scalar_select %p1997, %s1996, 31
        %s1999 = smul.addr %s1998, 8
        %s2000 = scalar_lea.vmem %s8, %s1999
      $region64: #{norlearner_forward.1} parent=59 // pred_fallthru
        _
    $region60: #{norlearner_forward.1} parent=5 // pred_fallthru
      _
  $region6: #{norlearner_forward.1} parent=0 // loop_footer
    %s18 = sadd.s32 1, %s14
  $region7: #{norlearner_forward.1} parent=0 // loop_footer_branch
    %13 = sbr.rel target = $region3
  $region8: #{norlearner_forward.1} parent=0 // loop_exit
    _

</llo_original>
